<compile_context>
chip_gen: v7x
topology: tpu7x:2x2x1
jax: 0.10.0
libtpu: 0.0.40
codegen_flags: <defaults>
</compile_context>

<pallas_src>
from functools import partial

import jax
import jax.numpy as jnp
from jax.experimental import pallas as pl
from jax.experimental.pallas import tpu as pltpu


def _round_up(x, m):
    return ((x + m - 1) // m) * m


# ----------------------------------------------------------------------------
# Pallas kernel: one grid step == one time-chunk of Tt steps.
#   x_ref   : (Tt*Bp, S)    raw states of the chunk (padded batch)
#   wf_ref  : (S, 3Hp)      fused  encoder->gates weights   [r | z | n]
#   bx_ref  : (1, 3Hp)      fused  input-side gate biases
#   wh_ref  : (Hp, 3Hp)     fused  hidden->gates weights
#   bh_ref  : (1, 3Hp)      hidden-side gate biases (only n-gate nonzero)
#   out_ref : (Tt*Bp, Hp)   hidden outputs for the chunk
#   h_ref   : VMEM (Bp, Hp) f32   carried hidden state (persists across chunks)
#   gx_ref  : VMEM (Tt*Bp, 3Hp) f32  chunk gate pre-activations (input side)
# ----------------------------------------------------------------------------
def _rec_gru_kernel(x_ref, wf_ref, bx_ref, wh_ref, bh_ref,
                    out_ref, h_ref, gx_ref, *, tt, bp, hp):
    c = pl.program_id(0)

    @pl.when(c == 0)
    def _():
        h_ref[...] = jnp.zeros_like(h_ref)

    # Hoisted input-side work: one large MXU matmul for all Tt steps of the chunk.
    gx_ref[...] = (
        jnp.dot(x_ref[...], wf_ref[...], preferred_element_type=jnp.float32)
        + bx_ref[...]
    )

    wh = wh_ref[...]
    bh = bh_ref[...]
    cdt = wh.dtype  # compute dtype for the per-step matmul (f32 or bf16)

    def step(t, h):
        row = pl.multiple_of(t * bp, bp)
        gx_t = gx_ref[pl.ds(row, bp), :]                       # (Bp, 3Hp) f32
        gh = jnp.dot(h.astype(cdt), wh,
                     preferred_element_type=jnp.float32) + bh  # (Bp, 3Hp) f32
        r = jax.nn.sigmoid(gx_t[:, 0:hp] + gh[:, 0:hp])
        z = jax.nn.sigmoid(gx_t[:, hp:2 * hp] + gh[:, hp:2 * hp])
        n = jnp.tanh(gx_t[:, 2 * hp:3 * hp] + r * gh[:, 2 * hp:3 * hp])
        h_new = (1.0 - z) * n + z * h                          # f32
        out_ref[pl.ds(row, bp), :] = h_new                     # 128-lane dense store
        return h_new

    h_final = jax.lax.fori_loop(0, tt, step, h_ref[...], unroll=True)
    h_ref[...] = h_final


# ----------------------------------------------------------------------------
# Wrapper: weight fusion/padding (one-time, tiny) + pallas_call
# ----------------------------------------------------------------------------
def recurrent_encoder_forward(x, params, *, compute_dtype=jnp.float32,
                              time_chunk=None):
    """x: tuple/list; x[0] is the state tensor of shape (T, B, state_dim)."""
    state = x[0]
    T, B, S = state.shape
    H = params["whr"].shape[0]

    LANE, SUB = 128, 8
    Hp = _round_up(H, LANE)
    Bp = _round_up(B, SUB)
    Tt = time_chunk if time_chunk is not None else min(T, 32)
    Tp = _round_up(T, Tt)
    n_chunks = Tp // Tt

    # --- fold the state encoder into the input->gate weights (done once) ---
    wx_cat = jnp.concatenate(
        [params["wxr"], params["wxz"], params["wxn"]], axis=1)            # (E, 3H)
    wf = params["wenc"] @ wx_cat                                          # (S, 3H)
    bx = params["benc"] @ wx_cat + jnp.concatenate(
        [params["br"], params["bz"], params["bin"]], axis=1)              # (1, 3H)
    wh = jnp.concatenate(
        [params["whr"], params["whz"], params["whn"]], axis=1)            # (H, 3H)
    zb = jnp.zeros_like(params["bhn"])
    bh = jnp.concatenate([zb, zb, params["bhn"]], axis=1)                 # (1, 3H)

    # --- pad each gate block H -> Hp on the lane axis (gate g lives at [g*Hp:g*Hp+H]) ---
    def pad_gates(a):
        parts = jnp.split(a, 3, axis=-1)
        parts = [jnp.pad(p, [(0, 0)] * (a.ndim - 1) + [(0, Hp - H)]) for p in parts]
        return jnp.concatenate(parts, axis=-1)

    wf_p = pad_gates(wf).astype(compute_dtype)                            # (S, 3Hp)
    bx_p = pad_gates(bx).astype(jnp.float32)                              # (1, 3Hp)
    wh_p = jnp.pad(pad_gates(wh), ((0, Hp - H), (0, 0))).astype(compute_dtype)  # (Hp, 3Hp)
    bh_p = pad_gates(bh).astype(jnp.float32)                              # (1, 3Hp)

    # --- pad activations: (T,B,S) -> (Tp, Bp, S) -> flat (Tp*Bp, S) ---
    xs = jnp.pad(state, ((0, Tp - T), (0, Bp - B), (0, 0)))
    x2d = xs.reshape(Tp * Bp, S).astype(compute_dtype)

    kernel = partial(_rec_gru_kernel, tt=Tt, bp=Bp, hp=Hp)

    grid_spec = pltpu.PrefetchScalarGridSpec(
        num_scalar_prefetch=0,
        grid=(n_chunks,),
        in_specs=[
            pl.BlockSpec((Tt * Bp, S), lambda c: (c, 0)),      # x chunk
            pl.BlockSpec((S, 3 * Hp), lambda c: (0, 0)),       # Wfused  (constant)
            pl.BlockSpec((1, 3 * Hp), lambda c: (0, 0)),       # bx      (constant)
            pl.BlockSpec((Hp, 3 * Hp), lambda c: (0, 0)),      # Wh_cat  (constant)
            pl.BlockSpec((1, 3 * Hp), lambda c: (0, 0)),       # bh      (constant)
        ],
        out_specs=pl.BlockSpec((Tt * Bp, Hp), lambda c: (c, 0)),
        scratch_shapes=[
            pltpu.VMEM((Bp, Hp), jnp.float32),          # carried hidden state (f32)
            pltpu.VMEM((Tt * Bp, 3 * Hp), jnp.float32),  # chunk gate pre-activations
        ],
    )

    out2d = pl.pallas_call(
        kernel,
        out_shape=jax.ShapeDtypeStruct((Tp * Bp, Hp), jnp.float32),
        grid_spec=grid_spec,
        compiler_params=pltpu.CompilerParams(
            dimension_semantics=("arbitrary",)),   # recurrence -> sequential axis
    )(x2d, wf_p, bx_p, wh_p, bh_p)

    return out2d.reshape(Tp, Bp, Hp)[:T, :B, :H]


# ----------------------------------------------------------------------------
# Pure-JAX reference (original, unfused math) for validation
# ----------------------------------------------------------------------------
def recurrent_encoder_reference(x, params):
    state = x[0]
    enc = state @ params["wenc"] + params["benc"]           # (T, B, E)
    B = state.shape[1]
    H = params["whr"].shape[0]

    def step(h, e):
        r = jax.nn.sigmoid(e @ params["wxr"] + h @ params["whr"] + params["br"])
        z = jax.nn.sigmoid(e @ params["wxz"] + h @ params["whz"] + params["bz"])
        n = jnp.tanh(e @ params["wxn"] + params["bin"]
                     + r * (h @ params["whn"] + params["bhn"]))
        h_new = (1.0 - z) * n + z * h
        return h_new, h_new

    h0 = jnp.zeros((B, H), jnp.float32)
    _, hs = jax.lax.scan(step, h0, enc)
    return hs


# ----------------------------------------------------------------------------
# Deterministic parameter construction
# ----------------------------------------------------------------------------
def make_params(key, state_dim, encoded_dim, hidden_dim):
    ks = jax.random.split(key, 13)
    u = lambda k, shape, scale: (jax.random.uniform(k, shape, jnp.float32) - 0.5) * 2 * scale
    se = 1.0 / jnp.sqrt(state_dim)
    sh = 1.0 / jnp.sqrt(hidden_dim)
    return {
        "wenc": u(ks[0], (state_dim, encoded_dim), se),
        "benc": u(ks[1], (1, encoded_dim), se),
        "wxr": u(ks[2], (encoded_dim, hidden_dim), sh),
        "wxz": u(ks[3], (encoded_dim, hidden_dim), sh),
        "wxn": u(ks[4], (encoded_dim, hidden_dim), sh),
        "whr": u(ks[5], (hidden_dim, hidden_dim), sh),
        "whz": u(ks[6], (hidden_dim, hidden_dim), sh),
        "whn": u(ks[7], (hidden_dim, hidden_dim), sh),
        "br":  u(ks[8], (1, hidden_dim), sh),
        "bz":  u(ks[9], (1, hidden_dim), sh),
        "bin": u(ks[10], (1, hidden_dim), sh),
        "bhn": u(ks[11], (1, hidden_dim), sh),
    }


if __name__ == "__main__":
    T, B, STATE_DIM, ENCODED_DIM, HIDDEN_DIM = 8, 4, 16, 32, 32

    key = jax.random.PRNGKey(0)
    k_x, k_p = jax.random.split(key)
    state = jax.random.normal(k_x, (T, B, STATE_DIM), jnp.float32)
    params = make_params(k_p, STATE_DIM, ENCODED_DIM, HIDDEN_DIM)

    x = (state,)   # module forward takes x and uses x[0]

    ref = jax.block_until_ready(recurrent_encoder_reference(x, params))

    # f32 matmul path (bit-accurate up to weight-fusion reassociation)
    out = jax.block_until_ready(recurrent_encoder_forward(x, params))
    assert out.shape == (T, B, HIDDEN_DIM), out.shape
    assert jnp.allclose(out, ref, atol=1e-4, rtol=1e-4), \
        float(jnp.max(jnp.abs(out - ref)))

    # bf16 matmul path (recommended on v6e/v7x): bf16 weights/activations,
    # f32 accumulation + f32 hidden-state carry.
    out_bf16 = jax.block_until_ready(
        recurrent_encoder_forward(x, params, compute_dtype=jnp.bfloat16))
    assert out_bf16.shape == (T, B, HIDDEN_DIM), out_bf16.shape
    assert jnp.allclose(out_bf16, ref, atol=5e-2, rtol=5e-2), \
        float(jnp.max(jnp.abs(out_bf16 - ref)))

    print("KERNEL_OK")
</pallas_src>

<mosaic_0001>
module attributes {stable_mosaic.version = 11 : i64} {
  func.func @_rec_gru_kernel(%arg0: i32, %arg1: memref<64x16xf32, #tpu.memory_space<vmem>>, %arg2: memref<16x384xf32, #tpu.memory_space<vmem>>, %arg3: memref<1x384xf32, #tpu.memory_space<vmem>>, %arg4: memref<128x384xf32, #tpu.memory_space<vmem>>, %arg5: memref<1x384xf32, #tpu.memory_space<vmem>>, %arg6: memref<64x128xf32, #tpu.memory_space<vmem>>, %arg7: memref<8x128xf32, #tpu.memory_space<vmem>>, %arg8: memref<64x384xf32, #tpu.memory_space<vmem>>) attributes {dimension_semantics = [#tpu.dimension_semantics<arbitrary>], iteration_bounds = array<i64: 1>, scalar_prefetch = 0 : i64, scratch_operands = 2 : i64, tpu.core_type = #tpu.core_type<tc>, window_params = [{transform_indices = @transform_0, window_bounds = array<i64: 64, 16>}, {pipeline_mode = #tpu.pipeline_mode<synchronous>, transform_indices = @transform_1, window_bounds = array<i64: 16, 384>}, {pipeline_mode = #tpu.pipeline_mode<synchronous>, transform_indices = @transform_2, window_bounds = array<i64: 1, 384>}, {pipeline_mode = #tpu.pipeline_mode<synchronous>, transform_indices = @transform_3, window_bounds = array<i64: 128, 384>}, {pipeline_mode = #tpu.pipeline_mode<synchronous>, transform_indices = @transform_4, window_bounds = array<i64: 1, 384>}, {transform_indices = @transform_5, window_bounds = array<i64: 64, 128>}]} {
    %c0_i32 = arith.constant 0 : i32
    %0 = arith.cmpi eq, %arg0, %c0_i32 : i32
    %1 = arith.extui %0 : i1 to i32
    %c0_i32_0 = arith.constant 0 : i32
    %2 = arith.cmpi ne, %1, %c0_i32_0 : i32
    scf.if %2 {
      %cst_73 = arith.constant 0.000000e+00 : f32
      %294 = vector.broadcast %cst_73 : f32 to vector<8x128xf32>
      %c0_74 = arith.constant 0 : index
      %c0_75 = arith.constant 0 : index
      %295 = vector.load %arg7[%c0_74, %c0_75] : memref<8x128xf32, #tpu.memory_space<vmem>>, vector<8x128xf32>
      tpu.vector_store %arg7[%c0_74, %c0_75], %294 {strides = array<i32>} : memref<8x128xf32, #tpu.memory_space<vmem>>, vector<8x128xf32>,
    } else {
    }
    %c0 = arith.constant 0 : index
    %c0_1 = arith.constant 0 : index
    %3 = vector.load %arg1[%c0, %c0_1] : memref<64x16xf32, #tpu.memory_space<vmem>>, vector<64x16xf32>
    %c0_2 = arith.constant 0 : index
    %c0_3 = arith.constant 0 : index
    %4 = vector.load %arg2[%c0_2, %c0_3] : memref<16x384xf32, #tpu.memory_space<vmem>>, vector<16x384xf32>
    %cst = arith.constant dense<0.000000e+00> : vector<64x384xf32>
    %5 = tpu.matmul %3, %4, %cst {dimension_numbers = #tpu.dot_dimension_numbers<[1], [0], [0], [1], [0, 0, 1, 1], [], []>} : vector<64x16xf32>, vector<16x384xf32>, vector<64x384xf32> -> vector<64x384xf32>
    %c0_4 = arith.constant 0 : index
    %c0_5 = arith.constant 0 : index
    %6 = vector.load %arg3[%c0_4, %c0_5] : memref<1x384xf32, #tpu.memory_space<vmem>>, vector<1x384xf32>
    %7 = vector.broadcast %6 : vector<1x384xf32> to vector<64x384xf32>
    %8 = arith.addf %5, %7 : vector<64x384xf32>
    %c0_6 = arith.constant 0 : index
    %c0_7 = arith.constant 0 : index
    %9 = vector.load %arg8[%c0_6, %c0_7] : memref<64x384xf32, #tpu.memory_space<vmem>>, vector<64x384xf32>
    tpu.vector_store %arg8[%c0_6, %c0_7], %8 {strides = array<i32>} : memref<64x384xf32, #tpu.memory_space<vmem>>, vector<64x384xf32>,
    %c0_8 = arith.constant 0 : index
    %c0_9 = arith.constant 0 : index
    %10 = vector.load %arg4[%c0_8, %c0_9] : memref<128x384xf32, #tpu.memory_space<vmem>>, vector<128x384xf32>
    %c0_10 = arith.constant 0 : index
    %c0_11 = arith.constant 0 : index
    %11 = vector.load %arg5[%c0_10, %c0_11] : memref<1x384xf32, #tpu.memory_space<vmem>>, vector<1x384xf32>
    %c0_12 = arith.constant 0 : index
    %c0_13 = arith.constant 0 : index
    %12 = vector.load %arg7[%c0_12, %c0_13] : memref<8x128xf32, #tpu.memory_space<vmem>>, vector<8x128xf32>
    %c0_i32_14 = arith.constant 0 : i32
    %c8_i32 = arith.constant 8 : i32
    %13 = arith.muli %c0_i32_14, %c8_i32 : i32
    %14 = tpu.assume_multiple %13, 8 : i32
    %15 = arith.index_cast %14 : i32 to index
    %c0_15 = arith.constant 0 : index
    %16 = vector.load %arg8[%15, %c0_15] : memref<64x384xf32, #tpu.memory_space<vmem>>, vector<8x384xf32>
    %cst_16 = arith.constant dense<0.000000e+00> : vector<8x384xf32>
    %17 = tpu.matmul %12, %10, %cst_16 {dimension_numbers = #tpu.dot_dimension_numbers<[1], [0], [0], [1], [0, 0, 1, 1], [], []>} : vector<8x128xf32>, vector<128x384xf32>, vector<8x384xf32> -> vector<8x384xf32>
    %18 = vector.broadcast %11 : vector<1x384xf32> to vector<8x384xf32>
    %19 = arith.addf %17, %18 : vector<8x384xf32>
    %20 = vector.extract_strided_slice %16 {offsets = [0, 0], sizes = [8, 128], strides = [1, 1]} : vector<8x384xf32> to vector<8x128xf32>
    %21 = vector.extract_strided_slice %19 {offsets = [0, 0], sizes = [8, 128], strides = [1, 1]} : vector<8x384xf32> to vector<8x128xf32>
    %22 = arith.addf %20, %21 : vector<8x128xf32>
    %23 = arith.negf %22 : vector<8x128xf32>
    %24 = math.exp %23 : vector<8x128xf32>
    %cst_17 = arith.constant 1.000000e+00 : f32
    %25 = vector.broadcast %cst_17 : f32 to vector<8x128xf32>
    %26 = arith.addf %25, %24 : vector<8x128xf32>
    %27 = arith.divf %25, %26 : vector<8x128xf32>
    %28 = vector.extract_strided_slice %16 {offsets = [0, 128], sizes = [8, 128], strides = [1, 1]} : vector<8x384xf32> to vector<8x128xf32>
    %29 = vector.extract_strided_slice %19 {offsets = [0, 128], sizes = [8, 128], strides = [1, 1]} : vector<8x384xf32> to vector<8x128xf32>
    %30 = arith.addf %28, %29 : vector<8x128xf32>
    %31 = arith.negf %30 : vector<8x128xf32>
    %32 = math.exp %31 : vector<8x128xf32>
    %cst_18 = arith.constant 1.000000e+00 : f32
    %33 = vector.broadcast %cst_18 : f32 to vector<8x128xf32>
    %34 = arith.addf %33, %32 : vector<8x128xf32>
    %35 = arith.divf %33, %34 : vector<8x128xf32>
    %36 = vector.extract_strided_slice %16 {offsets = [0, 256], sizes = [8, 128], strides = [1, 1]} : vector<8x384xf32> to vector<8x128xf32>
    %37 = vector.extract_strided_slice %19 {offsets = [0, 256], sizes = [8, 128], strides = [1, 1]} : vector<8x384xf32> to vector<8x128xf32>
    %38 = arith.mulf %27, %37 : vector<8x128xf32>
    %39 = arith.addf %36, %38 : vector<8x128xf32>
    %40 = math.tanh %39 : vector<8x128xf32>
    %cst_19 = arith.constant 1.000000e+00 : f32
    %41 = vector.broadcast %cst_19 : f32 to vector<8x128xf32>
    %42 = arith.subf %41, %35 : vector<8x128xf32>
    %43 = arith.mulf %42, %40 : vector<8x128xf32>
    %44 = arith.mulf %35, %12 : vector<8x128xf32>
    %45 = arith.addf %43, %44 : vector<8x128xf32>
    %46 = arith.index_cast %14 : i32 to index
    %c0_20 = arith.constant 0 : index
    %47 = vector.load %arg6[%46, %c0_20] : memref<64x128xf32, #tpu.memory_space<vmem>>, vector<8x128xf32>
    tpu.vector_store %arg6[%46, %c0_20], %45 {strides = array<i32>} : memref<64x128xf32, #tpu.memory_space<vmem>>, vector<8x128xf32>,
    %c1_i32 = arith.constant 1 : i32
    %c8_i32_21 = arith.constant 8 : i32
    %48 = arith.muli %c1_i32, %c8_i32_21 : i32
    %49 = tpu.assume_multiple %48, 8 : i32
    %50 = arith.index_cast %49 : i32 to index
    %c0_22 = arith.constant 0 : index
    %51 = vector.load %arg8[%50, %c0_22] : memref<64x384xf32, #tpu.memory_space<vmem>>, vector<8x384xf32>
    %cst_23 = arith.constant dense<0.000000e+00> : vector<8x384xf32>
    %52 = tpu.matmul %45, %10, %cst_23 {dimension_numbers = #tpu.dot_dimension_numbers<[1], [0], [0], [1], [0, 0, 1, 1], [], []>} : vector<8x128xf32>, vector<128x384xf32>, vector<8x384xf32> -> vector<8x384xf32>
    %53 = vector.broadcast %11 : vector<1x384xf32> to vector<8x384xf32>
    %54 = arith.addf %52, %53 : vector<8x384xf32>
    %55 = vector.extract_strided_slice %51 {offsets = [0, 0], sizes = [8, 128], strides = [1, 1]} : vector<8x384xf32> to vector<8x128xf32>
    %56 = vector.extract_strided_slice %54 {offsets = [0, 0], sizes = [8, 128], strides = [1, 1]} : vector<8x384xf32> to vector<8x128xf32>
    %57 = arith.addf %55, %56 : vector<8x128xf32>
    %58 = arith.negf %57 : vector<8x128xf32>
    %59 = math.exp %58 : vector<8x128xf32>
    %cst_24 = arith.constant 1.000000e+00 : f32
    %60 = vector.broadcast %cst_24 : f32 to vector<8x128xf32>
    %61 = arith.addf %60, %59 : vector<8x128xf32>
    %62 = arith.divf %60, %61 : vector<8x128xf32>
    %63 = vector.extract_strided_slice %51 {offsets = [0, 128], sizes = [8, 128], strides = [1, 1]} : vector<8x384xf32> to vector<8x128xf32>
    %64 = vector.extract_strided_slice %54 {offsets = [0, 128], sizes = [8, 128], strides = [1, 1]} : vector<8x384xf32> to vector<8x128xf32>
    %65 = arith.addf %63, %64 : vector<8x128xf32>
    %66 = arith.negf %65 : vector<8x128xf32>
    %67 = math.exp %66 : vector<8x128xf32>
    %cst_25 = arith.constant 1.000000e+00 : f32
    %68 = vector.broadcast %cst_25 : f32 to vector<8x128xf32>
    %69 = arith.addf %68, %67 : vector<8x128xf32>
    %70 = arith.divf %68, %69 : vector<8x128xf32>
    %71 = vector.extract_strided_slice %51 {offsets = [0, 256], sizes = [8, 128], strides = [1, 1]} : vector<8x384xf32> to vector<8x128xf32>
    %72 = vector.extract_strided_slice %54 {offsets = [0, 256], sizes = [8, 128], strides = [1, 1]} : vector<8x384xf32> to vector<8x128xf32>
    %73 = arith.mulf %62, %72 : vector<8x128xf32>
    %74 = arith.addf %71, %73 : vector<8x128xf32>
    %75 = math.tanh %74 : vector<8x128xf32>
    %cst_26 = arith.constant 1.000000e+00 : f32
    %76 = vector.broadcast %cst_26 : f32 to vector<8x128xf32>
    %77 = arith.subf %76, %70 : vector<8x128xf32>
    %78 = arith.mulf %77, %75 : vector<8x128xf32>
    %79 = arith.mulf %70, %45 : vector<8x128xf32>
    %80 = arith.addf %78, %79 : vector<8x128xf32>
    %81 = arith.index_cast %49 : i32 to index
    %c0_27 = arith.constant 0 : index
    %82 = vector.load %arg6[%81, %c0_27] : memref<64x128xf32, #tpu.memory_space<vmem>>, vector<8x128xf32>
    tpu.vector_store %arg6[%81, %c0_27], %80 {strides = array<i32>} : memref<64x128xf32, #tpu.memory_space<vmem>>, vector<8x128xf32>,
    %c2_i32 = arith.constant 2 : i32
    %c8_i32_28 = arith.constant 8 : i32
    %83 = arith.muli %c2_i32, %c8_i32_28 : i32
    %84 = tpu.assume_multiple %83, 8 : i32
    %85 = arith.index_cast %84 : i32 to index
    %c0_29 = arith.constant 0 : index
    %86 = vector.load %arg8[%85, %c0_29] : memref<64x384xf32, #tpu.memory_space<vmem>>, vector<8x384xf32>
    %cst_30 = arith.constant dense<0.000000e+00> : vector<8x384xf32>
    %87 = tpu.matmul %80, %10, %cst_30 {dimension_numbers = #tpu.dot_dimension_numbers<[1], [0], [0], [1], [0, 0, 1, 1], [], []>} : vector<8x128xf32>, vector<128x384xf32>, vector<8x384xf32> -> vector<8x384xf32>
    %88 = vector.broadcast %11 : vector<1x384xf32> to vector<8x384xf32>
    %89 = arith.addf %87, %88 : vector<8x384xf32>
    %90 = vector.extract_strided_slice %86 {offsets = [0, 0], sizes = [8, 128], strides = [1, 1]} : vector<8x384xf32> to vector<8x128xf32>
    %91 = vector.extract_strided_slice %89 {offsets = [0, 0], sizes = [8, 128], strides = [1, 1]} : vector<8x384xf32> to vector<8x128xf32>
    %92 = arith.addf %90, %91 : vector<8x128xf32>
    %93 = arith.negf %92 : vector<8x128xf32>
    %94 = math.exp %93 : vector<8x128xf32>
    %cst_31 = arith.constant 1.000000e+00 : f32
    %95 = vector.broadcast %cst_31 : f32 to vector<8x128xf32>
    %96 = arith.addf %95, %94 : vector<8x128xf32>
    %97 = arith.divf %95, %96 : vector<8x128xf32>
    %98 = vector.extract_strided_slice %86 {offsets = [0, 128], sizes = [8, 128], strides = [1, 1]} : vector<8x384xf32> to vector<8x128xf32>
    %99 = vector.extract_strided_slice %89 {offsets = [0, 128], sizes = [8, 128], strides = [1, 1]} : vector<8x384xf32> to vector<8x128xf32>
    %100 = arith.addf %98, %99 : vector<8x128xf32>
    %101 = arith.negf %100 : vector<8x128xf32>
    %102 = math.exp %101 : vector<8x128xf32>
    %cst_32 = arith.constant 1.000000e+00 : f32
    %103 = vector.broadcast %cst_32 : f32 to vector<8x128xf32>
    %104 = arith.addf %103, %102 : vector<8x128xf32>
    %105 = arith.divf %103, %104 : vector<8x128xf32>
    %106 = vector.extract_strided_slice %86 {offsets = [0, 256], sizes = [8, 128], strides = [1, 1]} : vector<8x384xf32> to vector<8x128xf32>
    %107 = vector.extract_strided_slice %89 {offsets = [0, 256], sizes = [8, 128], strides = [1, 1]} : vector<8x384xf32> to vector<8x128xf32>
    %108 = arith.mulf %97, %107 : vector<8x128xf32>
    %109 = arith.addf %106, %108 : vector<8x128xf32>
    %110 = math.tanh %109 : vector<8x128xf32>
    %cst_33 = arith.constant 1.000000e+00 : f32
    %111 = vector.broadcast %cst_33 : f32 to vector<8x128xf32>
    %112 = arith.subf %111, %105 : vector<8x128xf32>
    %113 = arith.mulf %112, %110 : vector<8x128xf32>
    %114 = arith.mulf %105, %80 : vector<8x128xf32>
    %115 = arith.addf %113, %114 : vector<8x128xf32>
    %116 = arith.index_cast %84 : i32 to index
    %c0_34 = arith.constant 0 : index
    %117 = vector.load %arg6[%116, %c0_34] : memref<64x128xf32, #tpu.memory_space<vmem>>, vector<8x128xf32>
    tpu.vector_store %arg6[%116, %c0_34], %115 {strides = array<i32>} : memref<64x128xf32, #tpu.memory_space<vmem>>, vector<8x128xf32>,
    %c3_i32 = arith.constant 3 : i32
    %c8_i32_35 = arith.constant 8 : i32
    %118 = arith.muli %c3_i32, %c8_i32_35 : i32
    %119 = tpu.assume_multiple %118, 8 : i32
    %120 = arith.index_cast %119 : i32 to index
    %c0_36 = arith.constant 0 : index
    %121 = vector.load %arg8[%120, %c0_36] : memref<64x384xf32, #tpu.memory_space<vmem>>, vector<8x384xf32>
    %cst_37 = arith.constant dense<0.000000e+00> : vector<8x384xf32>
    %122 = tpu.matmul %115, %10, %cst_37 {dimension_numbers = #tpu.dot_dimension_numbers<[1], [0], [0], [1], [0, 0, 1, 1], [], []>} : vector<8x128xf32>, vector<128x384xf32>, vector<8x384xf32> -> vector<8x384xf32>
    %123 = vector.broadcast %11 : vector<1x384xf32> to vector<8x384xf32>
    %124 = arith.addf %122, %123 : vector<8x384xf32>
    %125 = vector.extract_strided_slice %121 {offsets = [0, 0], sizes = [8, 128], strides = [1, 1]} : vector<8x384xf32> to vector<8x128xf32>
    %126 = vector.extract_strided_slice %124 {offsets = [0, 0], sizes = [8, 128], strides = [1, 1]} : vector<8x384xf32> to vector<8x128xf32>
    %127 = arith.addf %125, %126 : vector<8x128xf32>
    %128 = arith.negf %127 : vector<8x128xf32>
    %129 = math.exp %128 : vector<8x128xf32>
    %cst_38 = arith.constant 1.000000e+00 : f32
    %130 = vector.broadcast %cst_38 : f32 to vector<8x128xf32>
    %131 = arith.addf %130, %129 : vector<8x128xf32>
    %132 = arith.divf %130, %131 : vector<8x128xf32>
    %133 = vector.extract_strided_slice %121 {offsets = [0, 128], sizes = [8, 128], strides = [1, 1]} : vector<8x384xf32> to vector<8x128xf32>
    %134 = vector.extract_strided_slice %124 {offsets = [0, 128], sizes = [8, 128], strides = [1, 1]} : vector<8x384xf32> to vector<8x128xf32>
    %135 = arith.addf %133, %134 : vector<8x128xf32>
    %136 = arith.negf %135 : vector<8x128xf32>
    %137 = math.exp %136 : vector<8x128xf32>
    %cst_39 = arith.constant 1.000000e+00 : f32
    %138 = vector.broadcast %cst_39 : f32 to vector<8x128xf32>
    %139 = arith.addf %138, %137 : vector<8x128xf32>
    %140 = arith.divf %138, %139 : vector<8x128xf32>
    %141 = vector.extract_strided_slice %121 {offsets = [0, 256], sizes = [8, 128], strides = [1, 1]} : vector<8x384xf32> to vector<8x128xf32>
    %142 = vector.extract_strided_slice %124 {offsets = [0, 256], sizes = [8, 128], strides = [1, 1]} : vector<8x384xf32> to vector<8x128xf32>
    %143 = arith.mulf %132, %142 : vector<8x128xf32>
    %144 = arith.addf %141, %143 : vector<8x128xf32>
    %145 = math.tanh %144 : vector<8x128xf32>
    %cst_40 = arith.constant 1.000000e+00 : f32
    %146 = vector.broadcast %cst_40 : f32 to vector<8x128xf32>
    %147 = arith.subf %146, %140 : vector<8x128xf32>
    %148 = arith.mulf %147, %145 : vector<8x128xf32>
    %149 = arith.mulf %140, %115 : vector<8x128xf32>
    %150 = arith.addf %148, %149 : vector<8x128xf32>
    %151 = arith.index_cast %119 : i32 to index
    %c0_41 = arith.constant 0 : index
    %152 = vector.load %arg6[%151, %c0_41] : memref<64x128xf32, #tpu.memory_space<vmem>>, vector<8x128xf32>
    tpu.vector_store %arg6[%151, %c0_41], %150 {strides = array<i32>} : memref<64x128xf32, #tpu.memory_space<vmem>>, vector<8x128xf32>,
    %c4_i32 = arith.constant 4 : i32
    %c8_i32_42 = arith.constant 8 : i32
    %153 = arith.muli %c4_i32, %c8_i32_42 : i32
    %154 = tpu.assume_multiple %153, 8 : i32
    %155 = arith.index_cast %154 : i32 to index
    %c0_43 = arith.constant 0 : index
    %156 = vector.load %arg8[%155, %c0_43] : memref<64x384xf32, #tpu.memory_space<vmem>>, vector<8x384xf32>
    %cst_44 = arith.constant dense<0.000000e+00> : vector<8x384xf32>
    %157 = tpu.matmul %150, %10, %cst_44 {dimension_numbers = #tpu.dot_dimension_numbers<[1], [0], [0], [1], [0, 0, 1, 1], [], []>} : vector<8x128xf32>, vector<128x384xf32>, vector<8x384xf32> -> vector<8x384xf32>
    %158 = vector.broadcast %11 : vector<1x384xf32> to vector<8x384xf32>
    %159 = arith.addf %157, %158 : vector<8x384xf32>
    %160 = vector.extract_strided_slice %156 {offsets = [0, 0], sizes = [8, 128], strides = [1, 1]} : vector<8x384xf32> to vector<8x128xf32>
    %161 = vector.extract_strided_slice %159 {offsets = [0, 0], sizes = [8, 128], strides = [1, 1]} : vector<8x384xf32> to vector<8x128xf32>
    %162 = arith.addf %160, %161 : vector<8x128xf32>
    %163 = arith.negf %162 : vector<8x128xf32>
    %164 = math.exp %163 : vector<8x128xf32>
    %cst_45 = arith.constant 1.000000e+00 : f32
    %165 = vector.broadcast %cst_45 : f32 to vector<8x128xf32>
    %166 = arith.addf %165, %164 : vector<8x128xf32>
    %167 = arith.divf %165, %166 : vector<8x128xf32>
    %168 = vector.extract_strided_slice %156 {offsets = [0, 128], sizes = [8, 128], strides = [1, 1]} : vector<8x384xf32> to vector<8x128xf32>
    %169 = vector.extract_strided_slice %159 {offsets = [0, 128], sizes = [8, 128], strides = [1, 1]} : vector<8x384xf32> to vector<8x128xf32>
    %170 = arith.addf %168, %169 : vector<8x128xf32>
    %171 = arith.negf %170 : vector<8x128xf32>
    %172 = math.exp %171 : vector<8x128xf32>
    %cst_46 = arith.constant 1.000000e+00 : f32
    %173 = vector.broadcast %cst_46 : f32 to vector<8x128xf32>
    %174 = arith.addf %173, %172 : vector<8x128xf32>
    %175 = arith.divf %173, %174 : vector<8x128xf32>
    %176 = vector.extract_strided_slice %156 {offsets = [0, 256], sizes = [8, 128], strides = [1, 1]} : vector<8x384xf32> to vector<8x128xf32>
    %177 = vector.extract_strided_slice %159 {offsets = [0, 256], sizes = [8, 128], strides = [1, 1]} : vector<8x384xf32> to vector<8x128xf32>
    %178 = arith.mulf %167, %177 : vector<8x128xf32>
    %179 = arith.addf %176, %178 : vector<8x128xf32>
    %180 = math.tanh %179 : vector<8x128xf32>
    %cst_47 = arith.constant 1.000000e+00 : f32
    %181 = vector.broadcast %cst_47 : f32 to vector<8x128xf32>
    %182 = arith.subf %181, %175 : vector<8x128xf32>
    %183 = arith.mulf %182, %180 : vector<8x128xf32>
    %184 = arith.mulf %175, %150 : vector<8x128xf32>
    %185 = arith.addf %183, %184 : vector<8x128xf32>
    %186 = arith.index_cast %154 : i32 to index
    %c0_48 = arith.constant 0 : index
    %187 = vector.load %arg6[%186, %c0_48] : memref<64x128xf32, #tpu.memory_space<vmem>>, vector<8x128xf32>
    tpu.vector_store %arg6[%186, %c0_48], %185 {strides = array<i32>} : memref<64x128xf32, #tpu.memory_space<vmem>>, vector<8x128xf32>,
    %c5_i32 = arith.constant 5 : i32
    %c8_i32_49 = arith.constant 8 : i32
    %188 = arith.muli %c5_i32, %c8_i32_49 : i32
    %189 = tpu.assume_multiple %188, 8 : i32
    %190 = arith.index_cast %189 : i32 to index
    %c0_50 = arith.constant 0 : index
    %191 = vector.load %arg8[%190, %c0_50] : memref<64x384xf32, #tpu.memory_space<vmem>>, vector<8x384xf32>
    %cst_51 = arith.constant dense<0.000000e+00> : vector<8x384xf32>
    %192 = tpu.matmul %185, %10, %cst_51 {dimension_numbers = #tpu.dot_dimension_numbers<[1], [0], [0], [1], [0, 0, 1, 1], [], []>} : vector<8x128xf32>, vector<128x384xf32>, vector<8x384xf32> -> vector<8x384xf32>
    %193 = vector.broadcast %11 : vector<1x384xf32> to vector<8x384xf32>
    %194 = arith.addf %192, %193 : vector<8x384xf32>
    %195 = vector.extract_strided_slice %191 {offsets = [0, 0], sizes = [8, 128], strides = [1, 1]} : vector<8x384xf32> to vector<8x128xf32>
    %196 = vector.extract_strided_slice %194 {offsets = [0, 0], sizes = [8, 128], strides = [1, 1]} : vector<8x384xf32> to vector<8x128xf32>
    %197 = arith.addf %195, %196 : vector<8x128xf32>
    %198 = arith.negf %197 : vector<8x128xf32>
    %199 = math.exp %198 : vector<8x128xf32>
    %cst_52 = arith.constant 1.000000e+00 : f32
    %200 = vector.broadcast %cst_52 : f32 to vector<8x128xf32>
    %201 = arith.addf %200, %199 : vector<8x128xf32>
    %202 = arith.divf %200, %201 : vector<8x128xf32>
    %203 = vector.extract_strided_slice %191 {offsets = [0, 128], sizes = [8, 128], strides = [1, 1]} : vector<8x384xf32> to vector<8x128xf32>
    %204 = vector.extract_strided_slice %194 {offsets = [0, 128], sizes = [8, 128], strides = [1, 1]} : vector<8x384xf32> to vector<8x128xf32>
    %205 = arith.addf %203, %204 : vector<8x128xf32>
    %206 = arith.negf %205 : vector<8x128xf32>
    %207 = math.exp %206 : vector<8x128xf32>
    %cst_53 = arith.constant 1.000000e+00 : f32
    %208 = vector.broadcast %cst_53 : f32 to vector<8x128xf32>
    %209 = arith.addf %208, %207 : vector<8x128xf32>
    %210 = arith.divf %208, %209 : vector<8x128xf32>
    %211 = vector.extract_strided_slice %191 {offsets = [0, 256], sizes = [8, 128], strides = [1, 1]} : vector<8x384xf32> to vector<8x128xf32>
    %212 = vector.extract_strided_slice %194 {offsets = [0, 256], sizes = [8, 128], strides = [1, 1]} : vector<8x384xf32> to vector<8x128xf32>
    %213 = arith.mulf %202, %212 : vector<8x128xf32>
    %214 = arith.addf %211, %213 : vector<8x128xf32>
    %215 = math.tanh %214 : vector<8x128xf32>
    %cst_54 = arith.constant 1.000000e+00 : f32
    %216 = vector.broadcast %cst_54 : f32 to vector<8x128xf32>
    %217 = arith.subf %216, %210 : vector<8x128xf32>
    %218 = arith.mulf %217, %215 : vector<8x128xf32>
    %219 = arith.mulf %210, %185 : vector<8x128xf32>
    %220 = arith.addf %218, %219 : vector<8x128xf32>
    %221 = arith.index_cast %189 : i32 to index
    %c0_55 = arith.constant 0 : index
    %222 = vector.load %arg6[%221, %c0_55] : memref<64x128xf32, #tpu.memory_space<vmem>>, vector<8x128xf32>
    tpu.vector_store %arg6[%221, %c0_55], %220 {strides = array<i32>} : memref<64x128xf32, #tpu.memory_space<vmem>>, vector<8x128xf32>,
    %c6_i32 = arith.constant 6 : i32
    %c8_i32_56 = arith.constant 8 : i32
    %223 = arith.muli %c6_i32, %c8_i32_56 : i32
    %224 = tpu.assume_multiple %223, 8 : i32
    %225 = arith.index_cast %224 : i32 to index
    %c0_57 = arith.constant 0 : index
    %226 = vector.load %arg8[%225, %c0_57] : memref<64x384xf32, #tpu.memory_space<vmem>>, vector<8x384xf32>
    %cst_58 = arith.constant dense<0.000000e+00> : vector<8x384xf32>
    %227 = tpu.matmul %220, %10, %cst_58 {dimension_numbers = #tpu.dot_dimension_numbers<[1], [0], [0], [1], [0, 0, 1, 1], [], []>} : vector<8x128xf32>, vector<128x384xf32>, vector<8x384xf32> -> vector<8x384xf32>
    %228 = vector.broadcast %11 : vector<1x384xf32> to vector<8x384xf32>
    %229 = arith.addf %227, %228 : vector<8x384xf32>
    %230 = vector.extract_strided_slice %226 {offsets = [0, 0], sizes = [8, 128], strides = [1, 1]} : vector<8x384xf32> to vector<8x128xf32>
    %231 = vector.extract_strided_slice %229 {offsets = [0, 0], sizes = [8, 128], strides = [1, 1]} : vector<8x384xf32> to vector<8x128xf32>
    %232 = arith.addf %230, %231 : vector<8x128xf32>
    %233 = arith.negf %232 : vector<8x128xf32>
    %234 = math.exp %233 : vector<8x128xf32>
    %cst_59 = arith.constant 1.000000e+00 : f32
    %235 = vector.broadcast %cst_59 : f32 to vector<8x128xf32>
    %236 = arith.addf %235, %234 : vector<8x128xf32>
    %237 = arith.divf %235, %236 : vector<8x128xf32>
    %238 = vector.extract_strided_slice %226 {offsets = [0, 128], sizes = [8, 128], strides = [1, 1]} : vector<8x384xf32> to vector<8x128xf32>
    %239 = vector.extract_strided_slice %229 {offsets = [0, 128], sizes = [8, 128], strides = [1, 1]} : vector<8x384xf32> to vector<8x128xf32>
    %240 = arith.addf %238, %239 : vector<8x128xf32>
    %241 = arith.negf %240 : vector<8x128xf32>
    %242 = math.exp %241 : vector<8x128xf32>
    %cst_60 = arith.constant 1.000000e+00 : f32
    %243 = vector.broadcast %cst_60 : f32 to vector<8x128xf32>
    %244 = arith.addf %243, %242 : vector<8x128xf32>
    %245 = arith.divf %243, %244 : vector<8x128xf32>
    %246 = vector.extract_strided_slice %226 {offsets = [0, 256], sizes = [8, 128], strides = [1, 1]} : vector<8x384xf32> to vector<8x128xf32>
    %247 = vector.extract_strided_slice %229 {offsets = [0, 256], sizes = [8, 128], strides = [1, 1]} : vector<8x384xf32> to vector<8x128xf32>
    %248 = arith.mulf %237, %247 : vector<8x128xf32>
    %249 = arith.addf %246, %248 : vector<8x128xf32>
    %250 = math.tanh %249 : vector<8x128xf32>
    %cst_61 = arith.constant 1.000000e+00 : f32
    %251 = vector.broadcast %cst_61 : f32 to vector<8x128xf32>
    %252 = arith.subf %251, %245 : vector<8x128xf32>
    %253 = arith.mulf %252, %250 : vector<8x128xf32>
    %254 = arith.mulf %245, %220 : vector<8x128xf32>
    %255 = arith.addf %253, %254 : vector<8x128xf32>
    %256 = arith.index_cast %224 : i32 to index
    %c0_62 = arith.constant 0 : index
    %257 = vector.load %arg6[%256, %c0_62] : memref<64x128xf32, #tpu.memory_space<vmem>>, vector<8x128xf32>
    tpu.vector_store %arg6[%256, %c0_62], %255 {strides = array<i32>} : memref<64x128xf32, #tpu.memory_space<vmem>>, vector<8x128xf32>,
    %c7_i32 = arith.constant 7 : i32
    %c8_i32_63 = arith.constant 8 : i32
    %258 = arith.muli %c7_i32, %c8_i32_63 : i32
    %259 = tpu.assume_multiple %258, 8 : i32
    %260 = arith.index_cast %259 : i32 to index
    %c0_64 = arith.constant 0 : index
    %261 = vector.load %arg8[%260, %c0_64] : memref<64x384xf32, #tpu.memory_space<vmem>>, vector<8x384xf32>
    %cst_65 = arith.constant dense<0.000000e+00> : vector<8x384xf32>
    %262 = tpu.matmul %255, %10, %cst_65 {dimension_numbers = #tpu.dot_dimension_numbers<[1], [0], [0], [1], [0, 0, 1, 1], [], []>} : vector<8x128xf32>, vector<128x384xf32>, vector<8x384xf32> -> vector<8x384xf32>
    %263 = vector.broadcast %11 : vector<1x384xf32> to vector<8x384xf32>
    %264 = arith.addf %262, %263 : vector<8x384xf32>
    %265 = vector.extract_strided_slice %261 {offsets = [0, 0], sizes = [8, 128], strides = [1, 1]} : vector<8x384xf32> to vector<8x128xf32>
    %266 = vector.extract_strided_slice %264 {offsets = [0, 0], sizes = [8, 128], strides = [1, 1]} : vector<8x384xf32> to vector<8x128xf32>
    %267 = arith.addf %265, %266 : vector<8x128xf32>
    %268 = arith.negf %267 : vector<8x128xf32>
    %269 = math.exp %268 : vector<8x128xf32>
    %cst_66 = arith.constant 1.000000e+00 : f32
    %270 = vector.broadcast %cst_66 : f32 to vector<8x128xf32>
    %271 = arith.addf %270, %269 : vector<8x128xf32>
    %272 = arith.divf %270, %271 : vector<8x128xf32>
    %273 = vector.extract_strided_slice %261 {offsets = [0, 128], sizes = [8, 128], strides = [1, 1]} : vector<8x384xf32> to vector<8x128xf32>
    %274 = vector.extract_strided_slice %264 {offsets = [0, 128], sizes = [8, 128], strides = [1, 1]} : vector<8x384xf32> to vector<8x128xf32>
    %275 = arith.addf %273, %274 : vector<8x128xf32>
    %276 = arith.negf %275 : vector<8x128xf32>
    %277 = math.exp %276 : vector<8x128xf32>
    %cst_67 = arith.constant 1.000000e+00 : f32
    %278 = vector.broadcast %cst_67 : f32 to vector<8x128xf32>
    %279 = arith.addf %278, %277 : vector<8x128xf32>
    %280 = arith.divf %278, %279 : vector<8x128xf32>
    %281 = vector.extract_strided_slice %261 {offsets = [0, 256], sizes = [8, 128], strides = [1, 1]} : vector<8x384xf32> to vector<8x128xf32>
    %282 = vector.extract_strided_slice %264 {offsets = [0, 256], sizes = [8, 128], strides = [1, 1]} : vector<8x384xf32> to vector<8x128xf32>
    %283 = arith.mulf %272, %282 : vector<8x128xf32>
    %284 = arith.addf %281, %283 : vector<8x128xf32>
    %285 = math.tanh %284 : vector<8x128xf32>
    %cst_68 = arith.constant 1.000000e+00 : f32
    %286 = vector.broadcast %cst_68 : f32 to vector<8x128xf32>
    %287 = arith.subf %286, %280 : vector<8x128xf32>
    %288 = arith.mulf %287, %285 : vector<8x128xf32>
    %289 = arith.mulf %280, %255 : vector<8x128xf32>
    %290 = arith.addf %288, %289 : vector<8x128xf32>
    %291 = arith.index_cast %259 : i32 to index
    %c0_69 = arith.constant 0 : index
    %292 = vector.load %arg6[%291, %c0_69] : memref<64x128xf32, #tpu.memory_space<vmem>>, vector<8x128xf32>
    tpu.vector_store %arg6[%291, %c0_69], %290 {strides = array<i32>} : memref<64x128xf32, #tpu.memory_space<vmem>>, vector<8x128xf32>,
    %c8_i32_70 = arith.constant 8 : i32
    %c0_71 = arith.constant 0 : index
    %c0_72 = arith.constant 0 : index
    %293 = vector.load %arg7[%c0_71, %c0_72] : memref<8x128xf32, #tpu.memory_space<vmem>>, vector<8x128xf32>
    tpu.vector_store %arg7[%c0_71, %c0_72], %290 {strides = array<i32>} : memref<8x128xf32, #tpu.memory_space<vmem>>, vector<8x128xf32>,
    return
  }
  func.func @transform_0(%arg0: i32) -> (i32, i32) {
    %c0_i32 = arith.constant 0 : i32
    %c0_i32_0 = arith.constant 0 : i32
    return %arg0, %c0_i32 : i32, i32
  }
  func.func @transform_1(%arg0: i32) -> (i32, i32) {
    %c0_i32 = arith.constant 0 : i32
    %c0_i32_0 = arith.constant 0 : i32
    %c0_i32_1 = arith.constant 0 : i32
    return %c0_i32, %c0_i32_0 : i32, i32
  }
  func.func @transform_2(%arg0: i32) -> (i32, i32) {
    %c0_i32 = arith.constant 0 : i32
    %c0_i32_0 = arith.constant 0 : i32
    %c0_i32_1 = arith.constant 0 : i32
    return %c0_i32, %c0_i32_0 : i32, i32
  }
  func.func @transform_3(%arg0: i32) -> (i32, i32) {
    %c0_i32 = arith.constant 0 : i32
    %c0_i32_0 = arith.constant 0 : i32
    %c0_i32_1 = arith.constant 0 : i32
    return %c0_i32, %c0_i32_0 : i32, i32
  }
  func.func @transform_4(%arg0: i32) -> (i32, i32) {
    %c0_i32 = arith.constant 0 : i32
    %c0_i32_0 = arith.constant 0 : i32
    %c0_i32_1 = arith.constant 0 : i32
    return %c0_i32, %c0_i32_0 : i32, i32
  }
  func.func @transform_5(%arg0: i32) -> (i32, i32) {
    %c0_i32 = arith.constant 0 : i32
    %c0_i32_0 = arith.constant 0 : i32
    return %arg0, %c0_i32 : i32, i32
  }
}

</mosaic_0001>

<llo_original>
// kernel: tpu_custom_call.1
$region0: #{tpu_custom_call.1}
  #allocation0 [shape = 'u32[]', space=smem, size = 0x4, offset = 0x4, fixed_abs, tag = 'smem constant byte address 0x4 - core index']
  #allocation1 [shape = 'u32[144,128]{1,0:T(1,128)}', space=vmem, size = 0x12000, scoped, tag = 'internal scratch']
  #allocation2 [shape = 'f32[8,128]{1,0:T(8,128)}', space=vmem, size = 0x1000, scoped, tag = 'scratch operand']
  #allocation3 [shape = 'f32[64,384]{1,0:T(8,128)}', space=vmem, size = 0x18000, scoped, tag = 'scratch operand']
  %s0 = inlined_call_operand.vmem [shape: f32[64,16], index: 0, kind: input, shape index: {}]
  %s1 = inlined_call_operand.vmem [shape: f32[16,384], index: 1, kind: input, shape index: {}]
  %s2 = inlined_call_operand.vmem [shape: f32[1,384], index: 2, kind: input, shape index: {}]
  %s3 = inlined_call_operand.hbm [shape: f32[128,384], index: 3, kind: input, shape index: {}]
  %s4 = inlined_call_operand.vmem [shape: f32[1,384], index: 4, kind: input, shape index: {}]
  %s5 = inlined_call_operand.hbm [shape: f32[64,128], index: 5, kind: output, shape index: {}]
  %s6 = sld [smem:[#allocation0]]
  $region38: #{tpu_custom_call.1} parent=0
    _
  %s8 = ssub.s32 1, %s6
  %s9 = scalar_select 0, %s8, %s6
  $region1: #{tpu_custom_call.1} parent=0
    #allocation4 [shape = 'u8[196608]{0}', space=vmem, size = 0x30000, scoped, tag = 'input window, operand 3, single buffered']
    #allocation5 [shape = 's32[1]{0}', space=sflag, size = 0x4, scoped, tag = 'scoped memory for tpu_custom_call.1']
    #allocation6 [shape = 's32[1]{0}', space=sflag, size = 0x4, scoped, tag = 'scoped memory for tpu_custom_call.1']
    #allocation7 [shape = 'u8[32768]{0}', space=vmem, size = 0x8000, scoped, tag = 'output window, operand 0, single buffered']
    %10 = vsyncpa [#allocation5], 0
    %11 = vsyncpa [#allocation6], 0
    // Predicated region
    $region2: #{tpu_custom_call.1} parent=1 // pred_check
      _
    $region3: #{tpu_custom_call.1} parent=1 // pred_check_branch
      %13 = sbr.rel (0) target = $region5
    $region4: #{tpu_custom_call.1} parent=1 // pred_region
      _
    $region5: #{tpu_custom_call.1} parent=1 // pred_fallthru
      _
    // Predicated region
    $region6: #{tpu_custom_call.1} parent=1 // pred_check
      _
    $region7: #{tpu_custom_call.1} parent=1 // pred_check_branch
      %15 = sbr.rel (0) target = $region9
    $region8: #{tpu_custom_call.1} parent=1 // pred_region
      _
    $region9: #{tpu_custom_call.1} parent=1 // pred_fallthru
      _
    // Predicated region
    $region10: #{tpu_custom_call.1} parent=1 // pred_check
      _
    $region11: #{tpu_custom_call.1} parent=1 // pred_check_branch
      %17 = sbr.rel (0) target = $region13
    $region12: #{tpu_custom_call.1} parent=1 // pred_region
      _
    $region13: #{tpu_custom_call.1} parent=1 // pred_fallthru
      _
    // Predicated region
    $region14: #{tpu_custom_call.1} parent=1 // pred_check
      _
    $region15: #{tpu_custom_call.1} parent=1 // pred_check_branch
      %19 = sbr.rel (0) target = $region17
    $region16: #{tpu_custom_call.1} parent=1 // pred_region
      %s21 = ssub.s32 6144, 6144
      %22 = vsyncadd [#allocation5], %s21
      %s23 = sshll.u32 [#allocation4], 4
      %s24 = int_to_ptr.vmem [resolvable:$true] %s23
      %29 = dma.hbm_to_vmem [thread:$0]  %s3, 6144, %s24, [#allocation5], 384, 384, 24
    $region17: #{tpu_custom_call.1} parent=1 // pred_fallthru
      _
    // Predicated region
    $region18: #{tpu_custom_call.1} parent=1 // pred_check
      _
    $region19: #{tpu_custom_call.1} parent=1 // pred_check_branch
      %31 = sbr.rel (0) target = $region21
    $region20: #{tpu_custom_call.1} parent=1 // pred_region
      _
    $region21: #{tpu_custom_call.1} parent=1 // pred_fallthru
      _
    // Predicated region
    $region22: #{tpu_custom_call.1} parent=1 // pred_check
      _
    $region23: #{tpu_custom_call.1} parent=1 // pred_check_branch
      %33 = sbr.rel (0) target = $region25
    $region24: #{tpu_custom_call.1} parent=1 // pred_region
      %34 = dma.done [#allocation5], 6144
    $region25: #{tpu_custom_call.1} parent=1 // pred_fallthru
      _
    %p35 = scmp.eq.s32.totalorder 0, 0
    // Predicated region
    $region26: #{tpu_custom_call.1} parent=1 // pred_check
      %p36 = pneg %p35
    $region27: #{tpu_custom_call.1} parent=1 // pred_check_branch
      %38 = sbr.rel (%p36) target = $region29
    $region28: #{tpu_custom_call.1} parent=1 // pred_region
      %39 = vst [vmem:[#allocation2] sm:$0xff] 0.0
    $region29: #{tpu_custom_call.1} parent=1 // pred_fallthru
      _
    %v40 = vld [vmem:[%s0] sm:$0xff]
    %v41 = vld [vmem:[%s0 + $0x8] sm:$0xff]
    %v42 = vld [vmem:[%s0 + $0x10] sm:$0xff]
    %v43 = vld [vmem:[%s0 + $0x18] sm:$0xff]
    %v44 = vld [vmem:[%s0 + $0x20] sm:$0xff]
    %v45 = vld [vmem:[%s0 + $0x28] sm:$0xff]
    %v46 = vld [vmem:[%s0 + $0x30] sm:$0xff]
    %v47 = vld [vmem:[%s0 + $0x38] sm:$0xff]
    %v48 = vld [vmem:[%s1] sm:$0xff]
    %v49 = vld [vmem:[%s1 + $0x8] sm:$0xff]
    %v50 = vld [vmem:[%s1 + $0x10] sm:$0xff]
    %v51 = vld [vmem:[%s1 + $0x18] sm:$0xff]
    %v52 = vld [vmem:[%s1 + $0x20] sm:$0xff]
    %v53 = vld [vmem:[%s1 + $0x28] sm:$0xff]
    %v54 = vld [vmem:[%s2] sm:$0x7]
    %v56 = vlaneseq
    %v57 = vshrl.u32 %v56, 7
    %v58 = vsub.s32 0, %v57
    %v59 = vrot.slane %v54, %v58
    %v60 = vlaneseq
    %v61 = vshrl.u32 %v60, 7
    %v62 = vsub.s32 1, %v61
    %v63 = vrot.slane %v54, %v62
    %v64 = vlaneseq
    %v65 = vshrl.u32 %v64, 7
    %v66 = vsub.s32 2, %v65
    %v67 = vrot.slane %v54, %v66
    %vm71 = vcmask 130048
    %v73 = vsel %vm71, %v40, 0
    %v76 = vsel %vm71, %v41, 0
    %v79 = vsel %vm71, %v42, 0
    %v82 = vsel %vm71, %v43, 0
    %v85 = vsel %vm71, %v44, 0
    %v88 = vsel %vm71, %v45, 0
    %v91 = vsel %vm71, %v46, 0
    %v94 = vsel %vm71, %v47, 0
    %96 = vmatprep.subr.mxu0 %v49
    %97 = vmatpush1.msra.mxu0 %v48
    %98 = vmatprep.subr.mxu0 %v52
    %99 = vmatpush1.msra.mxu0 %v51
    %100 = vmatprep.subr.mxu0 0.0
    %101 = vmatpush1.msra.mxu0 0.0
    %102 = vmatprep.subr.mxu0 0.0
    %103 = vmatpush1.msra.mxu0 0.0
    %104 = vmatprep.subr.mxu0 0.0
    %105 = vmatpush1.msra.mxu0 0.0
    %106 = vmatprep.subr.mxu0 0.0
    %107 = vmatpush1.msra.mxu0 0.0
    %108 = vmatprep.subr.mxu0 0.0
    %109 = vmatpush1.msra.mxu0 0.0
    %110 = vmatprep.subr.mxu0 0.0
    %111 = vmatpush1.msra.mxu0 0.0
    %112 = vmatprep.subr.mxu0 0.0
    %113 = vmatpush1.msra.mxu0 0.0
    %114 = vmatprep.subr.mxu0 0.0
    %115 = vmatpush1.msra.mxu0 0.0
    %116 = vmatprep.subr.mxu0 0.0
    %117 = vmatpush1.msra.mxu0 0.0
    %118 = vmatprep.subr.mxu0 0.0
    %119 = vmatpush1.msra.mxu0 0.0
    %120 = vmatprep.subr.mxu0 0.0
    %121 = vmatpush1.msra.mxu0 0.0
    %122 = vmatprep.subr.mxu0 0.0
    %123 = vmatpush1.msra.mxu0 0.0
    %124 = vmatprep.subr.mxu0 0.0
    %125 = vmatpush1.msra.mxu0 0.0
    %126 = vmatprep.subr.mxu0 0.0
    %127 = vmatpush1.msra.mxu0 0.0
    %128 = vmatprep.subr.mxu0 0.0
    %129 = vmatpush1.msra.mxu0 0.0
    %130 = vmatprep.subr.mxu0 0.0
    %131 = vmatpush1.msra.mxu0 0.0
    %132 = vmatprep.subr.mxu0 0.0
    %133 = vmatpush1.msra.mxu0 0.0
    %134 = vmatprep.subr.mxu0 0.0
    %135 = vmatpush1.msra.mxu0 0.0
    %136 = vmatprep.subr.mxu0 0.0
    %137 = vmatpush1.msra.mxu0 0.0
    %138 = vmatprep.subr.mxu0 0.0
    %139 = vmatpush1.msra.mxu0 0.0
    %140 = vmatprep.subr.mxu0 0.0
    %141 = vmatpush1.msra.mxu0 0.0
    %142 = vmatprep.subr.mxu0 0.0
    %143 = vmatpush1.msra.mxu0 0.0
    %144 = vmatprep.subr.mxu0 0.0
    %145 = vmatpush1.msra.mxu0 0.0
    %146 = vmatprep.subr.mxu0 0.0
    %147 = vmatpush1.msra.mxu0 0.0
    %148 = vmatprep.subr.mxu0 0.0
    %149 = vmatpush1.msra.mxu0 0.0
    %150 = vmatprep.subr.mxu0 0.0
    %151 = vmatpush1.msra.mxu0 0.0
    %152 = vmatprep.subr.mxu0 0.0
    %153 = vmatpush1.msra.mxu0 0.0
    %154 = vmatprep.subr.mxu0 0.0
    %155 = vmatpush1.msra.mxu0 0.0
    %156 = vmatprep.subr.mxu0 0.0
    %157 = vmatpush1.msra.mxu0 0.0
    %158 = vmatprep.subr.mxu0 0.0
    %159 = vmatpush1.msra.mxu0 0.0
    %160 = vmatprep.mubr.f32.mxu0 0.0
    %161 = vmatmul.mubr.f32.gmra.mrb[0].mxu0 %v73
    %v162 = vpop.f32.mrb[0].mxu0
    %v163 = vadd.f32 %v59, %v162
    %v164 = vpop.f32.mrb[0].mxu0
    %v165 = vadd.f32 %v63, %v164
    %166 = vmatprep.mubr.f32.mxu0 0.0
    %167 = vmatmul.mubr.f32.gmra.mrb[0].mxu0 %v76
    %v168 = vpop.f32.mrb[0].mxu0
    %v169 = vadd.f32 %v59, %v168
    %v170 = vpop.f32.mrb[0].mxu0
    %v171 = vadd.f32 %v63, %v170
    %172 = vmatprep.mubr.f32.mxu0 0.0
    %173 = vmatmul.mubr.f32.gmra.mrb[0].mxu0 %v79
    %v174 = vpop.f32.mrb[0].mxu0
    %v175 = vadd.f32 %v59, %v174
    %v176 = vpop.f32.mrb[0].mxu0
    %v177 = vadd.f32 %v63, %v176
    %178 = vmatprep.mubr.f32.mxu0 0.0
    %179 = vmatmul.mubr.f32.gmra.mrb[0].mxu0 %v82
    %v180 = vpop.f32.mrb[0].mxu0
    %v181 = vadd.f32 %v59, %v180
    %v182 = vpop.f32.mrb[0].mxu0
    %v183 = vadd.f32 %v63, %v182
    %184 = vmatprep.mubr.f32.mxu0 0.0
    %185 = vmatmul.mubr.f32.gmra.mrb[0].mxu0 %v85
    %v186 = vpop.f32.mrb[0].mxu0
    %v187 = vadd.f32 %v59, %v186
    %v188 = vpop.f32.mrb[0].mxu0
    %v189 = vadd.f32 %v63, %v188
    %190 = vmatprep.mubr.f32.mxu0 0.0
    %191 = vmatmul.mubr.f32.gmra.mrb[0].mxu0 %v88
    %v192 = vpop.f32.mrb[0].mxu0
    %v193 = vadd.f32 %v59, %v192
    %v194 = vpop.f32.mrb[0].mxu0
    %v195 = vadd.f32 %v63, %v194
    %196 = vmatprep.mubr.f32.mxu0 0.0
    %197 = vmatmul.mubr.f32.gmra.mrb[0].mxu0 %v91
    %v198 = vpop.f32.mrb[0].mxu0
    %v199 = vadd.f32 %v59, %v198
    %v200 = vpop.f32.mrb[0].mxu0
    %v201 = vadd.f32 %v63, %v200
    %202 = vmatprep.mubr.f32.mxu0 0.0
    %203 = vmatmul.mubr.f32.gmra.mrb[0].mxu0 %v94
    %v204 = vpop.f32.mrb[0].mxu0
    %v205 = vadd.f32 %v59, %v204
    %v206 = vpop.f32.mrb[0].mxu0
    %v207 = vadd.f32 %v63, %v206
    %208 = vdwg.mxu0
    %209 = vmatprep.subr.mxu0 0.0
    %210 = vmatpush1.msra.mxu0 %v50
    %211 = vmatprep.subr.mxu0 0.0
    %212 = vmatpush1.msra.mxu0 %v53
    %213 = vmatprep.subr.mxu0 0.0
    %214 = vmatpush1.msra.mxu0 0.0
    %215 = vmatprep.subr.mxu0 0.0
    %216 = vmatpush1.msra.mxu0 0.0
    %217 = vmatprep.subr.mxu0 0.0
    %218 = vmatpush1.msra.mxu0 0.0
    %219 = vmatprep.subr.mxu0 0.0
    %220 = vmatpush1.msra.mxu0 0.0
    %221 = vmatprep.subr.mxu0 0.0
    %222 = vmatpush1.msra.mxu0 0.0
    %223 = vmatprep.subr.mxu0 0.0
    %224 = vmatpush1.msra.mxu0 0.0
    %225 = vmatprep.subr.mxu0 0.0
    %226 = vmatpush1.msra.mxu0 0.0
    %227 = vmatprep.subr.mxu0 0.0
    %228 = vmatpush1.msra.mxu0 0.0
    %229 = vmatprep.subr.mxu0 0.0
    %230 = vmatpush1.msra.mxu0 0.0
    %231 = vmatprep.subr.mxu0 0.0
    %232 = vmatpush1.msra.mxu0 0.0
    %233 = vmatprep.subr.mxu0 0.0
    %234 = vmatpush1.msra.mxu0 0.0
    %235 = vmatprep.subr.mxu0 0.0
    %236 = vmatpush1.msra.mxu0 0.0
    %237 = vmatprep.subr.mxu0 0.0
    %238 = vmatpush1.msra.mxu0 0.0
    %239 = vmatprep.subr.mxu0 0.0
    %240 = vmatpush1.msra.mxu0 0.0
    %241 = vmatprep.subr.mxu0 0.0
    %242 = vmatpush1.msra.mxu0 0.0
    %243 = vmatprep.subr.mxu0 0.0
    %244 = vmatpush1.msra.mxu0 0.0
    %245 = vmatprep.subr.mxu0 0.0
    %246 = vmatpush1.msra.mxu0 0.0
    %247 = vmatprep.subr.mxu0 0.0
    %248 = vmatpush1.msra.mxu0 0.0
    %249 = vmatprep.subr.mxu0 0.0
    %250 = vmatpush1.msra.mxu0 0.0
    %251 = vmatprep.subr.mxu0 0.0
    %252 = vmatpush1.msra.mxu0 0.0
    %253 = vmatprep.subr.mxu0 0.0
    %254 = vmatpush1.msra.mxu0 0.0
    %255 = vmatprep.subr.mxu0 0.0
    %256 = vmatpush1.msra.mxu0 0.0
    %257 = vmatprep.subr.mxu0 0.0
    %258 = vmatpush1.msra.mxu0 0.0
    %259 = vmatprep.subr.mxu0 0.0
    %260 = vmatpush1.msra.mxu0 0.0
    %261 = vmatprep.subr.mxu0 0.0
    %262 = vmatpush1.msra.mxu0 0.0
    %263 = vmatprep.subr.mxu0 0.0
    %264 = vmatpush1.msra.mxu0 0.0
    %265 = vmatprep.subr.mxu0 0.0
    %266 = vmatpush1.msra.mxu0 0.0
    %267 = vmatprep.subr.mxu0 0.0
    %268 = vmatpush1.msra.mxu0 0.0
    %269 = vmatprep.subr.mxu0 0.0
    %270 = vmatpush1.msra.mxu0 0.0
    %271 = vmatprep.subr.mxu0 0.0
    %272 = vmatpush1.msra.mxu0 0.0
    %273 = vmatprep.mubr.f32.mxu0 0.0
    %274 = vmatmul.mubr.f32.gmra.mrb[0].mxu0 %v73
    %v275 = vpop.f32.mrb[0].mxu0
    %v276 = vadd.f32 %v67, %v275
    %v277 = vpop.f32.mrb[0].mxu0
    %278 = vmatprep.mubr.f32.mxu0 0.0
    %279 = vmatmul.mubr.f32.gmra.mrb[0].mxu0 %v76
    %v280 = vpop.f32.mrb[0].mxu0
    %v281 = vadd.f32 %v67, %v280
    %v282 = vpop.f32.mrb[0].mxu0
    %283 = vmatprep.mubr.f32.mxu0 0.0
    %284 = vmatmul.mubr.f32.gmra.mrb[0].mxu0 %v79
    %v285 = vpop.f32.mrb[0].mxu0
    %v286 = vadd.f32 %v67, %v285
    %v287 = vpop.f32.mrb[0].mxu0
    %288 = vmatprep.mubr.f32.mxu0 0.0
    %289 = vmatmul.mubr.f32.gmra.mrb[0].mxu0 %v82
    %v290 = vpop.f32.mrb[0].mxu0
    %v291 = vadd.f32 %v67, %v290
    %v292 = vpop.f32.mrb[0].mxu0
    %293 = vmatprep.mubr.f32.mxu0 0.0
    %294 = vmatmul.mubr.f32.gmra.mrb[0].mxu0 %v85
    %v295 = vpop.f32.mrb[0].mxu0
    %v296 = vadd.f32 %v67, %v295
    %v297 = vpop.f32.mrb[0].mxu0
    %298 = vmatprep.mubr.f32.mxu0 0.0
    %299 = vmatmul.mubr.f32.gmra.mrb[0].mxu0 %v88
    %v300 = vpop.f32.mrb[0].mxu0
    %v301 = vadd.f32 %v67, %v300
    %v302 = vpop.f32.mrb[0].mxu0
    %303 = vmatprep.mubr.f32.mxu0 0.0
    %304 = vmatmul.mubr.f32.gmra.mrb[0].mxu0 %v91
    %v305 = vpop.f32.mrb[0].mxu0
    %v306 = vadd.f32 %v67, %v305
    %v307 = vpop.f32.mrb[0].mxu0
    %308 = vmatprep.mubr.f32.mxu0 0.0
    %309 = vmatmul.mubr.f32.gmra.mrb[0].mxu0 %v94
    %v310 = vpop.f32.mrb[0].mxu0
    %v311 = vadd.f32 %v67, %v310
    %v312 = vpop.f32.mrb[0].mxu0
    %313 = vdwg.mxu0
    %314 = vst [vmem:[#allocation3] sm:$0xff] %v163
    %315 = vst [vmem:[#allocation3 + $0x8] sm:$0xff] %v165
    %316 = vst [vmem:[#allocation3 + $0x10] sm:$0xff] %v276
    %317 = vst [vmem:[#allocation3 + $0x18] sm:$0xff] %v169
    %318 = vst [vmem:[#allocation3 + $0x20] sm:$0xff] %v171
    %319 = vst [vmem:[#allocation3 + $0x28] sm:$0xff] %v281
    %320 = vst [vmem:[#allocation3 + $0x30] sm:$0xff] %v175
    %321 = vst [vmem:[#allocation3 + $0x38] sm:$0xff] %v177
    %322 = vst [vmem:[#allocation3 + $0x40] sm:$0xff] %v286
    %323 = vst [vmem:[#allocation3 + $0x48] sm:$0xff] %v181
    %324 = vst [vmem:[#allocation3 + $0x50] sm:$0xff] %v183
    %325 = vst [vmem:[#allocation3 + $0x58] sm:$0xff] %v291
    %326 = vst [vmem:[#allocation3 + $0x60] sm:$0xff] %v187
    %327 = vst [vmem:[#allocation3 + $0x68] sm:$0xff] %v189
    %328 = vst [vmem:[#allocation3 + $0x70] sm:$0xff] %v296
    %329 = vst [vmem:[#allocation3 + $0x78] sm:$0xff] %v193
    %330 = vst [vmem:[#allocation3 + $0x80] sm:$0xff] %v195
    %331 = vst [vmem:[#allocation3 + $0x88] sm:$0xff] %v301
    %332 = vst [vmem:[#allocation3 + $0x90] sm:$0xff] %v199
    %333 = vst [vmem:[#allocation3 + $0x98] sm:$0xff] %v201
    %334 = vst [vmem:[#allocation3 + $0xa0] sm:$0xff] %v306
    %335 = vst [vmem:[#allocation3 + $0xa8] sm:$0xff] %v205
    %336 = vst [vmem:[#allocation3 + $0xb0] sm:$0xff] %v207
    %337 = vst [vmem:[#allocation3 + $0xb8] sm:$0xff] %v311
    %v338 = vld [vmem:[#allocation4] sm:$0xff]
    %v339 = vld [vmem:[#allocation4 + $0x8] sm:$0xff]
    %v340 = vld [vmem:[#allocation4 + $0x10] sm:$0xff]
    %v341 = vld [vmem:[#allocation4 + $0x18] sm:$0xff]
    %v342 = vld [vmem:[#allocation4 + $0x20] sm:$0xff]
    %v343 = vld [vmem:[#allocation4 + $0x28] sm:$0xff]
    %v344 = vld [vmem:[#allocation4 + $0x30] sm:$0xff]
    %v345 = vld [vmem:[#allocation4 + $0x38] sm:$0xff]
    %v346 = vld [vmem:[#allocation4 + $0x40] sm:$0xff]
    %v347 = vld [vmem:[#allocation4 + $0x48] sm:$0xff]
    %v348 = vld [vmem:[#allocation4 + $0x50] sm:$0xff]
    %v349 = vld [vmem:[#allocation4 + $0x58] sm:$0xff]
    %v350 = vld [vmem:[#allocation4 + $0x60] sm:$0xff]
    %v351 = vld [vmem:[#allocation4 + $0x68] sm:$0xff]
    %v352 = vld [vmem:[#allocation4 + $0x70] sm:$0xff]
    %v353 = vld [vmem:[#allocation4 + $0x78] sm:$0xff]
    %v354 = vld [vmem:[#allocation4 + $0x80] sm:$0xff]
    %v355 = vld [vmem:[#allocation4 + $0x88] sm:$0xff]
    %v356 = vld [vmem:[#allocation4 + $0x90] sm:$0xff]
    %v357 = vld [vmem:[#allocation4 + $0x98] sm:$0xff]
    %v358 = vld [vmem:[#allocation4 + $0xa0] sm:$0xff]
    %v359 = vld [vmem:[#allocation4 + $0xa8] sm:$0xff]
    %v360 = vld [vmem:[#allocation4 + $0xb0] sm:$0xff]
    %v361 = vld [vmem:[#allocation4 + $0xb8] sm:$0xff]
    %v362 = vld [vmem:[#allocation4 + $0xc0] sm:$0xff]
    %v363 = vld [vmem:[#allocation4 + $0xc8] sm:$0xff]
    %v364 = vld [vmem:[#allocation4 + $0xd0] sm:$0xff]
    %v365 = vld [vmem:[#allocation4 + $0xd8] sm:$0xff]
    %v366 = vld [vmem:[#allocation4 + $0xe0] sm:$0xff]
    %v367 = vld [vmem:[#allocation4 + $0xe8] sm:$0xff]
    %v368 = vld [vmem:[#allocation4 + $0xf0] sm:$0xff]
    %v369 = vld [vmem:[#allocation4 + $0xf8] sm:$0xff]
    %v370 = vld [vmem:[#allocation4 + $0x100] sm:$0xff]
    %v371 = vld [vmem:[#allocation4 + $0x108] sm:$0xff]
    %v372 = vld [vmem:[#allocation4 + $0x110] sm:$0xff]
    %v373 = vld [vmem:[#allocation4 + $0x118] sm:$0xff]
    %v374 = vld [vmem:[#allocation4 + $0x120] sm:$0xff]
    %v375 = vld [vmem:[#allocation4 + $0x128] sm:$0xff]
    %v376 = vld [vmem:[#allocation4 + $0x130] sm:$0xff]
    %v377 = vld [vmem:[#allocation4 + $0x138] sm:$0xff]
    %v378 = vld [vmem:[#allocation4 + $0x140] sm:$0xff]
    %v379 = vld [vmem:[#allocation4 + $0x148] sm:$0xff]
    %v380 = vld [vmem:[#allocation4 + $0x150] sm:$0xff]
    %v381 = vld [vmem:[#allocation4 + $0x158] sm:$0xff]
    %v382 = vld [vmem:[#allocation4 + $0x160] sm:$0xff]
    %v383 = vld [vmem:[#allocation4 + $0x168] sm:$0xff]
    %v384 = vld [vmem:[#allocation4 + $0x170] sm:$0xff]
    %v385 = vld [vmem:[#allocation4 + $0x178] sm:$0xff]
    %v386 = vld [vmem:[%s4] sm:$0x7]
    %v387 = vld [vmem:[#allocation2] sm:$0xff]
    %s388 = smul.u32 0, 3
    %s389 = smul.addr %s388, 8
    %s390 = scalar_lea.vmem [#allocation3], %s389
    %v391 = vld [vmem:[%s390] sm:$0xff]
    %v392 = vld [vmem:[%s390 + $0x8] sm:$0xff]
    %v393 = vld [vmem:[%s390 + $0x10] sm:$0xff]
    %v395 = vlaneseq
    %v396 = vshrl.u32 %v395, 7
    %v397 = vsub.s32 0, %v396
    %v398 = vrot.slane %v386, %v397
    %v399 = vlaneseq
    %v400 = vshrl.u32 %v399, 7
    %v401 = vsub.s32 1, %v400
    %v402 = vrot.slane %v386, %v401
    %v403 = vlaneseq
    %v404 = vshrl.u32 %v403, 7
    %v405 = vsub.s32 2, %v404
    %v406 = vrot.slane %v386, %v405
    %410 = vmatprep.subr.mxu0 %v339
    %411 = vmatpush1.msra.mxu0 %v338
    %412 = vmatprep.subr.mxu0 %v342
    %413 = vmatpush1.msra.mxu0 %v341
    %414 = vmatprep.subr.mxu0 %v345
    %415 = vmatpush1.msra.mxu0 %v344
    %416 = vmatprep.subr.mxu0 %v348
    %417 = vmatpush1.msra.mxu0 %v347
    %418 = vmatprep.subr.mxu0 %v351
    %419 = vmatpush1.msra.mxu0 %v350
    %420 = vmatprep.subr.mxu0 %v354
    %421 = vmatpush1.msra.mxu0 %v353
    %422 = vmatprep.subr.mxu0 %v357
    %423 = vmatpush1.msra.mxu0 %v356
    %424 = vmatprep.subr.mxu0 %v360
    %425 = vmatpush1.msra.mxu0 %v359
    %426 = vmatprep.subr.mxu0 %v363
    %427 = vmatpush1.msra.mxu0 %v362
    %428 = vmatprep.subr.mxu0 %v366
    %429 = vmatpush1.msra.mxu0 %v365
    %430 = vmatprep.subr.mxu0 %v369
    %431 = vmatpush1.msra.mxu0 %v368
    %432 = vmatprep.subr.mxu0 %v372
    %433 = vmatpush1.msra.mxu0 %v371
    %434 = vmatprep.subr.mxu0 %v375
    %435 = vmatpush1.msra.mxu0 %v374
    %436 = vmatprep.subr.mxu0 %v378
    %437 = vmatpush1.msra.mxu0 %v377
    %438 = vmatprep.subr.mxu0 %v381
    %439 = vmatpush1.msra.mxu0 %v380
    %440 = vmatprep.subr.mxu0 %v384
    %441 = vmatpush1.msra.mxu0 %v383
    %442 = vmatprep.subr.mxu0 0.0
    %443 = vmatpush1.msra.mxu0 0.0
    %444 = vmatprep.subr.mxu0 0.0
    %445 = vmatpush1.msra.mxu0 0.0
    %446 = vmatprep.subr.mxu0 0.0
    %447 = vmatpush1.msra.mxu0 0.0
    %448 = vmatprep.subr.mxu0 0.0
    %449 = vmatpush1.msra.mxu0 0.0
    %450 = vmatprep.subr.mxu0 0.0
    %451 = vmatpush1.msra.mxu0 0.0
    %452 = vmatprep.subr.mxu0 0.0
    %453 = vmatpush1.msra.mxu0 0.0
    %454 = vmatprep.subr.mxu0 0.0
    %455 = vmatpush1.msra.mxu0 0.0
    %456 = vmatprep.subr.mxu0 0.0
    %457 = vmatpush1.msra.mxu0 0.0
    %458 = vmatprep.subr.mxu0 0.0
    %459 = vmatpush1.msra.mxu0 0.0
    %460 = vmatprep.subr.mxu0 0.0
    %461 = vmatpush1.msra.mxu0 0.0
    %462 = vmatprep.subr.mxu0 0.0
    %463 = vmatpush1.msra.mxu0 0.0
    %464 = vmatprep.subr.mxu0 0.0
    %465 = vmatpush1.msra.mxu0 0.0
    %466 = vmatprep.subr.mxu0 0.0
    %467 = vmatpush1.msra.mxu0 0.0
    %468 = vmatprep.subr.mxu0 0.0
    %469 = vmatpush1.msra.mxu0 0.0
    %470 = vmatprep.subr.mxu0 0.0
    %471 = vmatpush1.msra.mxu0 0.0
    %472 = vmatprep.subr.mxu0 0.0
    %473 = vmatpush1.msra.mxu0 0.0
    %474 = vmatprep.mubr.f32.mxu0 0.0
    %475 = vmatmul.mubr.f32.gmra.mrb[0].mxu0 %v387
    %v476 = vpop.f32.mrb[0].mxu0
    %v477 = vadd.f32 %v398, %v476
    %v478 = vpop.f32.mrb[0].mxu0
    %v479 = vadd.f32 %v402, %v478
    %480 = vdwg.mxu0
    %481 = vmatprep.subr.mxu0 0.0
    %482 = vmatpush1.msra.mxu0 %v340
    %483 = vmatprep.subr.mxu0 0.0
    %484 = vmatpush1.msra.mxu0 %v343
    %485 = vmatprep.subr.mxu0 0.0
    %486 = vmatpush1.msra.mxu0 %v346
    %487 = vmatprep.subr.mxu0 0.0
    %488 = vmatpush1.msra.mxu0 %v349
    %489 = vmatprep.subr.mxu0 0.0
    %490 = vmatpush1.msra.mxu0 %v352
    %491 = vmatprep.subr.mxu0 0.0
    %492 = vmatpush1.msra.mxu0 %v355
    %493 = vmatprep.subr.mxu0 0.0
    %494 = vmatpush1.msra.mxu0 %v358
    %495 = vmatprep.subr.mxu0 0.0
    %496 = vmatpush1.msra.mxu0 %v361
    %497 = vmatprep.subr.mxu0 0.0
    %498 = vmatpush1.msra.mxu0 %v364
    %499 = vmatprep.subr.mxu0 0.0
    %500 = vmatpush1.msra.mxu0 %v367
    %501 = vmatprep.subr.mxu0 0.0
    %502 = vmatpush1.msra.mxu0 %v370
    %503 = vmatprep.subr.mxu0 0.0
    %504 = vmatpush1.msra.mxu0 %v373
    %505 = vmatprep.subr.mxu0 0.0
    %506 = vmatpush1.msra.mxu0 %v376
    %507 = vmatprep.subr.mxu0 0.0
    %508 = vmatpush1.msra.mxu0 %v379
    %509 = vmatprep.subr.mxu0 0.0
    %510 = vmatpush1.msra.mxu0 %v382
    %511 = vmatprep.subr.mxu0 0.0
    %512 = vmatpush1.msra.mxu0 %v385
    %513 = vmatprep.subr.mxu0 0.0
    %514 = vmatpush1.msra.mxu0 0.0
    %515 = vmatprep.subr.mxu0 0.0
    %516 = vmatpush1.msra.mxu0 0.0
    %517 = vmatprep.subr.mxu0 0.0
    %518 = vmatpush1.msra.mxu0 0.0
    %519 = vmatprep.subr.mxu0 0.0
    %520 = vmatpush1.msra.mxu0 0.0
    %521 = vmatprep.subr.mxu0 0.0
    %522 = vmatpush1.msra.mxu0 0.0
    %523 = vmatprep.subr.mxu0 0.0
    %524 = vmatpush1.msra.mxu0 0.0
    %525 = vmatprep.subr.mxu0 0.0
    %526 = vmatpush1.msra.mxu0 0.0
    %527 = vmatprep.subr.mxu0 0.0
    %528 = vmatpush1.msra.mxu0 0.0
    %529 = vmatprep.subr.mxu0 0.0
    %530 = vmatpush1.msra.mxu0 0.0
    %531 = vmatprep.subr.mxu0 0.0
    %532 = vmatpush1.msra.mxu0 0.0
    %533 = vmatprep.subr.mxu0 0.0
    %534 = vmatpush1.msra.mxu0 0.0
    %535 = vmatprep.subr.mxu0 0.0
    %536 = vmatpush1.msra.mxu0 0.0
    %537 = vmatprep.subr.mxu0 0.0
    %538 = vmatpush1.msra.mxu0 0.0
    %539 = vmatprep.subr.mxu0 0.0
    %540 = vmatpush1.msra.mxu0 0.0
    %541 = vmatprep.subr.mxu0 0.0
    %542 = vmatpush1.msra.mxu0 0.0
    %543 = vmatprep.subr.mxu0 0.0
    %544 = vmatpush1.msra.mxu0 0.0
    %545 = vmatprep.mubr.f32.mxu0 0.0
    %546 = vmatmul.mubr.f32.gmra.mrb[0].mxu0 %v387
    %v547 = vpop.f32.mrb[0].mxu0
    %v548 = vadd.f32 %v406, %v547
    %v549 = vpop.f32.mrb[0].mxu0
    %550 = vdwg.mxu0
    %v551 = vadd.f32 %v391, %v477
    %v552 = vxor.u32 %v551, 2147483648
    %v553 = vmul.f32 %v552, 1.442695
    %v554 = vpow.pop %v553
    %v555 = vadd.f32 %v554, 1.0
    %v556 = vrcp.pop %v555
    %v557 = vmul.f32 1.0, %v556
    %v558 = vadd.f32 %v392, %v479
    %v559 = vxor.u32 %v558, 2147483648
    %v560 = vmul.f32 %v559, 1.442695
    %v561 = vpow.pop %v560
    %v562 = vadd.f32 %v561, 1.0
    %v563 = vrcp.pop %v562
    %v564 = vmul.f32 1.0, %v563
    %v565 = vmul.f32 %v557, %v548
    %v566 = vadd.f32 %v393, %v565
    %v567 = vtanh.pop %v566
    %v568 = vsub.f32 1.0, %v564
    %v569 = vmul.f32 %v568, %v567
    %v570 = vmul.f32 %v564, %v387
    %v571 = vadd.f32 %v569, %v570
    %572 = vst [vmem:[#allocation7] sm:$0xff] %v571
    %s573 = smul.u32 1, 3
    %s574 = smul.addr %s573, 8
    %s575 = scalar_lea.vmem [#allocation3], %s574
    %v576 = vld [vmem:[%s575] sm:$0xff]
    %v577 = vld [vmem:[%s575 + $0x8] sm:$0xff]
    %v578 = vld [vmem:[%s575 + $0x10] sm:$0xff]
    %579 = vmatprep.subr.mxu0 %v339
    %580 = vmatpush1.msra.mxu0 %v338
    %581 = vmatprep.subr.mxu0 %v342
    %582 = vmatpush1.msra.mxu0 %v341
    %583 = vmatprep.subr.mxu0 %v345
    %584 = vmatpush1.msra.mxu0 %v344
    %585 = vmatprep.subr.mxu0 %v348
    %586 = vmatpush1.msra.mxu0 %v347
    %587 = vmatprep.subr.mxu0 %v351
    %588 = vmatpush1.msra.mxu0 %v350
    %589 = vmatprep.subr.mxu0 %v354
    %590 = vmatpush1.msra.mxu0 %v353
    %591 = vmatprep.subr.mxu0 %v357
    %592 = vmatpush1.msra.mxu0 %v356
    %593 = vmatprep.subr.mxu0 %v360
    %594 = vmatpush1.msra.mxu0 %v359
    %595 = vmatprep.subr.mxu0 %v363
    %596 = vmatpush1.msra.mxu0 %v362
    %597 = vmatprep.subr.mxu0 %v366
    %598 = vmatpush1.msra.mxu0 %v365
    %599 = vmatprep.subr.mxu0 %v369
    %600 = vmatpush1.msra.mxu0 %v368
    %601 = vmatprep.subr.mxu0 %v372
    %602 = vmatpush1.msra.mxu0 %v371
    %603 = vmatprep.subr.mxu0 %v375
    %604 = vmatpush1.msra.mxu0 %v374
    %605 = vmatprep.subr.mxu0 %v378
    %606 = vmatpush1.msra.mxu0 %v377
    %607 = vmatprep.subr.mxu0 %v381
    %608 = vmatpush1.msra.mxu0 %v380
    %609 = vmatprep.subr.mxu0 %v384
    %610 = vmatpush1.msra.mxu0 %v383
    %611 = vmatprep.subr.mxu0 0.0
    %612 = vmatpush1.msra.mxu0 0.0
    %613 = vmatprep.subr.mxu0 0.0
    %614 = vmatpush1.msra.mxu0 0.0
    %615 = vmatprep.subr.mxu0 0.0
    %616 = vmatpush1.msra.mxu0 0.0
    %617 = vmatprep.subr.mxu0 0.0
    %618 = vmatpush1.msra.mxu0 0.0
    %619 = vmatprep.subr.mxu0 0.0
    %620 = vmatpush1.msra.mxu0 0.0
    %621 = vmatprep.subr.mxu0 0.0
    %622 = vmatpush1.msra.mxu0 0.0
    %623 = vmatprep.subr.mxu0 0.0
    %624 = vmatpush1.msra.mxu0 0.0
    %625 = vmatprep.subr.mxu0 0.0
    %626 = vmatpush1.msra.mxu0 0.0
    %627 = vmatprep.subr.mxu0 0.0
    %628 = vmatpush1.msra.mxu0 0.0
    %629 = vmatprep.subr.mxu0 0.0
    %630 = vmatpush1.msra.mxu0 0.0
    %631 = vmatprep.subr.mxu0 0.0
    %632 = vmatpush1.msra.mxu0 0.0
    %633 = vmatprep.subr.mxu0 0.0
    %634 = vmatpush1.msra.mxu0 0.0
    %635 = vmatprep.subr.mxu0 0.0
    %636 = vmatpush1.msra.mxu0 0.0
    %637 = vmatprep.subr.mxu0 0.0
    %638 = vmatpush1.msra.mxu0 0.0
    %639 = vmatprep.subr.mxu0 0.0
    %640 = vmatpush1.msra.mxu0 0.0
    %641 = vmatprep.subr.mxu0 0.0
    %642 = vmatpush1.msra.mxu0 0.0
    %643 = vmatprep.mubr.f32.mxu0 0.0
    %644 = vmatmul.mubr.f32.gmra.mrb[0].mxu0 %v571
    %v645 = vpop.f32.mrb[0].mxu0
    %v646 = vadd.f32 %v398, %v645
    %v647 = vpop.f32.mrb[0].mxu0
    %v648 = vadd.f32 %v402, %v647
    %649 = vdwg.mxu0
    %650 = vmatprep.subr.mxu0 0.0
    %651 = vmatpush1.msra.mxu0 %v340
    %652 = vmatprep.subr.mxu0 0.0
    %653 = vmatpush1.msra.mxu0 %v343
    %654 = vmatprep.subr.mxu0 0.0
    %655 = vmatpush1.msra.mxu0 %v346
    %656 = vmatprep.subr.mxu0 0.0
    %657 = vmatpush1.msra.mxu0 %v349
    %658 = vmatprep.subr.mxu0 0.0
    %659 = vmatpush1.msra.mxu0 %v352
    %660 = vmatprep.subr.mxu0 0.0
    %661 = vmatpush1.msra.mxu0 %v355
    %662 = vmatprep.subr.mxu0 0.0
    %663 = vmatpush1.msra.mxu0 %v358
    %664 = vmatprep.subr.mxu0 0.0
    %665 = vmatpush1.msra.mxu0 %v361
    %666 = vmatprep.subr.mxu0 0.0
    %667 = vmatpush1.msra.mxu0 %v364
    %668 = vmatprep.subr.mxu0 0.0
    %669 = vmatpush1.msra.mxu0 %v367
    %670 = vmatprep.subr.mxu0 0.0
    %671 = vmatpush1.msra.mxu0 %v370
    %672 = vmatprep.subr.mxu0 0.0
    %673 = vmatpush1.msra.mxu0 %v373
    %674 = vmatprep.subr.mxu0 0.0
    %675 = vmatpush1.msra.mxu0 %v376
    %676 = vmatprep.subr.mxu0 0.0
    %677 = vmatpush1.msra.mxu0 %v379
    %678 = vmatprep.subr.mxu0 0.0
    %679 = vmatpush1.msra.mxu0 %v382
    %680 = vmatprep.subr.mxu0 0.0
    %681 = vmatpush1.msra.mxu0 %v385
    %682 = vmatprep.subr.mxu0 0.0
    %683 = vmatpush1.msra.mxu0 0.0
    %684 = vmatprep.subr.mxu0 0.0
    %685 = vmatpush1.msra.mxu0 0.0
    %686 = vmatprep.subr.mxu0 0.0
    %687 = vmatpush1.msra.mxu0 0.0
    %688 = vmatprep.subr.mxu0 0.0
    %689 = vmatpush1.msra.mxu0 0.0
    %690 = vmatprep.subr.mxu0 0.0
    %691 = vmatpush1.msra.mxu0 0.0
    %692 = vmatprep.subr.mxu0 0.0
    %693 = vmatpush1.msra.mxu0 0.0
    %694 = vmatprep.subr.mxu0 0.0
    %695 = vmatpush1.msra.mxu0 0.0
    %696 = vmatprep.subr.mxu0 0.0
    %697 = vmatpush1.msra.mxu0 0.0
    %698 = vmatprep.subr.mxu0 0.0
    %699 = vmatpush1.msra.mxu0 0.0
    %700 = vmatprep.subr.mxu0 0.0
    %701 = vmatpush1.msra.mxu0 0.0
    %702 = vmatprep.subr.mxu0 0.0
    %703 = vmatpush1.msra.mxu0 0.0
    %704 = vmatprep.subr.mxu0 0.0
    %705 = vmatpush1.msra.mxu0 0.0
    %706 = vmatprep.subr.mxu0 0.0
    %707 = vmatpush1.msra.mxu0 0.0
    %708 = vmatprep.subr.mxu0 0.0
    %709 = vmatpush1.msra.mxu0 0.0
    %710 = vmatprep.subr.mxu0 0.0
    %711 = vmatpush1.msra.mxu0 0.0
    %712 = vmatprep.subr.mxu0 0.0
    %713 = vmatpush1.msra.mxu0 0.0
    %714 = vmatprep.mubr.f32.mxu0 0.0
    %715 = vmatmul.mubr.f32.gmra.mrb[0].mxu0 %v571
    %v716 = vpop.f32.mrb[0].mxu0
    %v717 = vadd.f32 %v406, %v716
    %v718 = vpop.f32.mrb[0].mxu0
    %719 = vdwg.mxu0
    %v720 = vadd.f32 %v576, %v646
    %v721 = vxor.u32 %v720, 2147483648
    %v722 = vmul.f32 %v721, 1.442695
    %v723 = vpow.pop %v722
    %v724 = vadd.f32 %v723, 1.0
    %v725 = vrcp.pop %v724
    %v726 = vmul.f32 1.0, %v725
    %v727 = vadd.f32 %v577, %v648
    %v728 = vxor.u32 %v727, 2147483648
    %v729 = vmul.f32 %v728, 1.442695
    %v730 = vpow.pop %v729
    %v731 = vadd.f32 %v730, 1.0
    %v732 = vrcp.pop %v731
    %v733 = vmul.f32 1.0, %v732
    %v734 = vmul.f32 %v726, %v717
    %v735 = vadd.f32 %v578, %v734
    %v736 = vtanh.pop %v735
    %v737 = vsub.f32 1.0, %v733
    %v738 = vmul.f32 %v737, %v736
    %v739 = vmul.f32 %v733, %v571
    %v740 = vadd.f32 %v738, %v739
    %s741 = scalar_lea.vmem [#allocation7], 8
    %742 = vst [vmem:[%s741] sm:$0xff] %v740
    %s743 = smul.u32 2, 3
    %s744 = smul.addr %s743, 8
    %s745 = scalar_lea.vmem [#allocation3], %s744
    %v746 = vld [vmem:[%s745] sm:$0xff]
    %v747 = vld [vmem:[%s745 + $0x8] sm:$0xff]
    %v748 = vld [vmem:[%s745 + $0x10] sm:$0xff]
    %749 = vmatprep.subr.mxu0 %v339
    %750 = vmatpush1.msra.mxu0 %v338
    %751 = vmatprep.subr.mxu0 %v342
    %752 = vmatpush1.msra.mxu0 %v341
    %753 = vmatprep.subr.mxu0 %v345
    %754 = vmatpush1.msra.mxu0 %v344
    %755 = vmatprep.subr.mxu0 %v348
    %756 = vmatpush1.msra.mxu0 %v347
    %757 = vmatprep.subr.mxu0 %v351
    %758 = vmatpush1.msra.mxu0 %v350
    %759 = vmatprep.subr.mxu0 %v354
    %760 = vmatpush1.msra.mxu0 %v353
    %761 = vmatprep.subr.mxu0 %v357
    %762 = vmatpush1.msra.mxu0 %v356
    %763 = vmatprep.subr.mxu0 %v360
    %764 = vmatpush1.msra.mxu0 %v359
    %765 = vmatprep.subr.mxu0 %v363
    %766 = vmatpush1.msra.mxu0 %v362
    %767 = vmatprep.subr.mxu0 %v366
    %768 = vmatpush1.msra.mxu0 %v365
    %769 = vmatprep.subr.mxu0 %v369
    %770 = vmatpush1.msra.mxu0 %v368
    %771 = vmatprep.subr.mxu0 %v372
    %772 = vmatpush1.msra.mxu0 %v371
    %773 = vmatprep.subr.mxu0 %v375
    %774 = vmatpush1.msra.mxu0 %v374
    %775 = vmatprep.subr.mxu0 %v378
    %776 = vmatpush1.msra.mxu0 %v377
    %777 = vmatprep.subr.mxu0 %v381
    %778 = vmatpush1.msra.mxu0 %v380
    %779 = vmatprep.subr.mxu0 %v384
    %780 = vmatpush1.msra.mxu0 %v383
    %781 = vmatprep.subr.mxu0 0.0
    %782 = vmatpush1.msra.mxu0 0.0
    %783 = vmatprep.subr.mxu0 0.0
    %784 = vmatpush1.msra.mxu0 0.0
    %785 = vmatprep.subr.mxu0 0.0
    %786 = vmatpush1.msra.mxu0 0.0
    %787 = vmatprep.subr.mxu0 0.0
    %788 = vmatpush1.msra.mxu0 0.0
    %789 = vmatprep.subr.mxu0 0.0
    %790 = vmatpush1.msra.mxu0 0.0
    %791 = vmatprep.subr.mxu0 0.0
    %792 = vmatpush1.msra.mxu0 0.0
    %793 = vmatprep.subr.mxu0 0.0
    %794 = vmatpush1.msra.mxu0 0.0
    %795 = vmatprep.subr.mxu0 0.0
    %796 = vmatpush1.msra.mxu0 0.0
    %797 = vmatprep.subr.mxu0 0.0
    %798 = vmatpush1.msra.mxu0 0.0
    %799 = vmatprep.subr.mxu0 0.0
    %800 = vmatpush1.msra.mxu0 0.0
    %801 = vmatprep.subr.mxu0 0.0
    %802 = vmatpush1.msra.mxu0 0.0
    %803 = vmatprep.subr.mxu0 0.0
    %804 = vmatpush1.msra.mxu0 0.0
    %805 = vmatprep.subr.mxu0 0.0
    %806 = vmatpush1.msra.mxu0 0.0
    %807 = vmatprep.subr.mxu0 0.0
    %808 = vmatpush1.msra.mxu0 0.0
    %809 = vmatprep.subr.mxu0 0.0
    %810 = vmatpush1.msra.mxu0 0.0
    %811 = vmatprep.subr.mxu0 0.0
    %812 = vmatpush1.msra.mxu0 0.0
    %813 = vmatprep.mubr.f32.mxu0 0.0
    %814 = vmatmul.mubr.f32.gmra.mrb[0].mxu0 %v740
    %v815 = vpop.f32.mrb[0].mxu0
    %v816 = vadd.f32 %v398, %v815
    %v817 = vpop.f32.mrb[0].mxu0
    %v818 = vadd.f32 %v402, %v817
    %819 = vdwg.mxu0
    %820 = vmatprep.subr.mxu0 0.0
    %821 = vmatpush1.msra.mxu0 %v340
    %822 = vmatprep.subr.mxu0 0.0
    %823 = vmatpush1.msra.mxu0 %v343
    %824 = vmatprep.subr.mxu0 0.0
    %825 = vmatpush1.msra.mxu0 %v346
    %826 = vmatprep.subr.mxu0 0.0
    %827 = vmatpush1.msra.mxu0 %v349
    %828 = vmatprep.subr.mxu0 0.0
    %829 = vmatpush1.msra.mxu0 %v352
    %830 = vmatprep.subr.mxu0 0.0
    %831 = vmatpush1.msra.mxu0 %v355
    %832 = vmatprep.subr.mxu0 0.0
    %833 = vmatpush1.msra.mxu0 %v358
    %834 = vmatprep.subr.mxu0 0.0
    %835 = vmatpush1.msra.mxu0 %v361
    %836 = vmatprep.subr.mxu0 0.0
    %837 = vmatpush1.msra.mxu0 %v364
    %838 = vmatprep.subr.mxu0 0.0
    %839 = vmatpush1.msra.mxu0 %v367
    %840 = vmatprep.subr.mxu0 0.0
    %841 = vmatpush1.msra.mxu0 %v370
    %842 = vmatprep.subr.mxu0 0.0
    %843 = vmatpush1.msra.mxu0 %v373
    %844 = vmatprep.subr.mxu0 0.0
    %845 = vmatpush1.msra.mxu0 %v376
    %846 = vmatprep.subr.mxu0 0.0
    %847 = vmatpush1.msra.mxu0 %v379
    %848 = vmatprep.subr.mxu0 0.0
    %849 = vmatpush1.msra.mxu0 %v382
    %850 = vmatprep.subr.mxu0 0.0
    %851 = vmatpush1.msra.mxu0 %v385
    %852 = vmatprep.subr.mxu0 0.0
    %853 = vmatpush1.msra.mxu0 0.0
    %854 = vmatprep.subr.mxu0 0.0
    %855 = vmatpush1.msra.mxu0 0.0
    %856 = vmatprep.subr.mxu0 0.0
    %857 = vmatpush1.msra.mxu0 0.0
    %858 = vmatprep.subr.mxu0 0.0
    %859 = vmatpush1.msra.mxu0 0.0
    %860 = vmatprep.subr.mxu0 0.0
    %861 = vmatpush1.msra.mxu0 0.0
    %862 = vmatprep.subr.mxu0 0.0
    %863 = vmatpush1.msra.mxu0 0.0
    %864 = vmatprep.subr.mxu0 0.0
    %865 = vmatpush1.msra.mxu0 0.0
    %866 = vmatprep.subr.mxu0 0.0
    %867 = vmatpush1.msra.mxu0 0.0
    %868 = vmatprep.subr.mxu0 0.0
    %869 = vmatpush1.msra.mxu0 0.0
    %870 = vmatprep.subr.mxu0 0.0
    %871 = vmatpush1.msra.mxu0 0.0
    %872 = vmatprep.subr.mxu0 0.0
    %873 = vmatpush1.msra.mxu0 0.0
    %874 = vmatprep.subr.mxu0 0.0
    %875 = vmatpush1.msra.mxu0 0.0
    %876 = vmatprep.subr.mxu0 0.0
    %877 = vmatpush1.msra.mxu0 0.0
    %878 = vmatprep.subr.mxu0 0.0
    %879 = vmatpush1.msra.mxu0 0.0
    %880 = vmatprep.subr.mxu0 0.0
    %881 = vmatpush1.msra.mxu0 0.0
    %882 = vmatprep.subr.mxu0 0.0
    %883 = vmatpush1.msra.mxu0 0.0
    %884 = vmatprep.mubr.f32.mxu0 0.0
    %885 = vmatmul.mubr.f32.gmra.mrb[0].mxu0 %v740
    %v886 = vpop.f32.mrb[0].mxu0
    %v887 = vadd.f32 %v406, %v886
    %v888 = vpop.f32.mrb[0].mxu0
    %889 = vdwg.mxu0
    %v890 = vadd.f32 %v746, %v816
    %v891 = vxor.u32 %v890, 2147483648
    %v892 = vmul.f32 %v891, 1.442695
    %v893 = vpow.pop %v892
    %v894 = vadd.f32 %v893, 1.0
    %v895 = vrcp.pop %v894
    %v896 = vmul.f32 1.0, %v895
    %v897 = vadd.f32 %v747, %v818
    %v898 = vxor.u32 %v897, 2147483648
    %v899 = vmul.f32 %v898, 1.442695
    %v900 = vpow.pop %v899
    %v901 = vadd.f32 %v900, 1.0
    %v902 = vrcp.pop %v901
    %v903 = vmul.f32 1.0, %v902
    %v904 = vmul.f32 %v896, %v887
    %v905 = vadd.f32 %v748, %v904
    %v906 = vtanh.pop %v905
    %v907 = vsub.f32 1.0, %v903
    %v908 = vmul.f32 %v907, %v906
    %v909 = vmul.f32 %v903, %v740
    %v910 = vadd.f32 %v908, %v909
    %s911 = scalar_lea.vmem [#allocation7], 16
    %912 = vst [vmem:[%s911] sm:$0xff] %v910
    %s913 = smul.u32 3, 3
    %s914 = smul.addr %s913, 8
    %s915 = scalar_lea.vmem [#allocation3], %s914
    %v916 = vld [vmem:[%s915] sm:$0xff]
    %v917 = vld [vmem:[%s915 + $0x8] sm:$0xff]
    %v918 = vld [vmem:[%s915 + $0x10] sm:$0xff]
    %919 = vmatprep.subr.mxu0 %v339
    %920 = vmatpush1.msra.mxu0 %v338
    %921 = vmatprep.subr.mxu0 %v342
    %922 = vmatpush1.msra.mxu0 %v341
    %923 = vmatprep.subr.mxu0 %v345
    %924 = vmatpush1.msra.mxu0 %v344
    %925 = vmatprep.subr.mxu0 %v348
    %926 = vmatpush1.msra.mxu0 %v347
    %927 = vmatprep.subr.mxu0 %v351
    %928 = vmatpush1.msra.mxu0 %v350
    %929 = vmatprep.subr.mxu0 %v354
    %930 = vmatpush1.msra.mxu0 %v353
    %931 = vmatprep.subr.mxu0 %v357
    %932 = vmatpush1.msra.mxu0 %v356
    %933 = vmatprep.subr.mxu0 %v360
    %934 = vmatpush1.msra.mxu0 %v359
    %935 = vmatprep.subr.mxu0 %v363
    %936 = vmatpush1.msra.mxu0 %v362
    %937 = vmatprep.subr.mxu0 %v366
    %938 = vmatpush1.msra.mxu0 %v365
    %939 = vmatprep.subr.mxu0 %v369
    %940 = vmatpush1.msra.mxu0 %v368
    %941 = vmatprep.subr.mxu0 %v372
    %942 = vmatpush1.msra.mxu0 %v371
    %943 = vmatprep.subr.mxu0 %v375
    %944 = vmatpush1.msra.mxu0 %v374
    %945 = vmatprep.subr.mxu0 %v378
    %946 = vmatpush1.msra.mxu0 %v377
    %947 = vmatprep.subr.mxu0 %v381
    %948 = vmatpush1.msra.mxu0 %v380
    %949 = vmatprep.subr.mxu0 %v384
    %950 = vmatpush1.msra.mxu0 %v383
    %951 = vmatprep.subr.mxu0 0.0
    %952 = vmatpush1.msra.mxu0 0.0
    %953 = vmatprep.subr.mxu0 0.0
    %954 = vmatpush1.msra.mxu0 0.0
    %955 = vmatprep.subr.mxu0 0.0
    %956 = vmatpush1.msra.mxu0 0.0
    %957 = vmatprep.subr.mxu0 0.0
    %958 = vmatpush1.msra.mxu0 0.0
    %959 = vmatprep.subr.mxu0 0.0
    %960 = vmatpush1.msra.mxu0 0.0
    %961 = vmatprep.subr.mxu0 0.0
    %962 = vmatpush1.msra.mxu0 0.0
    %963 = vmatprep.subr.mxu0 0.0
    %964 = vmatpush1.msra.mxu0 0.0
    %965 = vmatprep.subr.mxu0 0.0
    %966 = vmatpush1.msra.mxu0 0.0
    %967 = vmatprep.subr.mxu0 0.0
    %968 = vmatpush1.msra.mxu0 0.0
    %969 = vmatprep.subr.mxu0 0.0
    %970 = vmatpush1.msra.mxu0 0.0
    %971 = vmatprep.subr.mxu0 0.0
    %972 = vmatpush1.msra.mxu0 0.0
    %973 = vmatprep.subr.mxu0 0.0
    %974 = vmatpush1.msra.mxu0 0.0
    %975 = vmatprep.subr.mxu0 0.0
    %976 = vmatpush1.msra.mxu0 0.0
    %977 = vmatprep.subr.mxu0 0.0
    %978 = vmatpush1.msra.mxu0 0.0
    %979 = vmatprep.subr.mxu0 0.0
    %980 = vmatpush1.msra.mxu0 0.0
    %981 = vmatprep.subr.mxu0 0.0
    %982 = vmatpush1.msra.mxu0 0.0
    %983 = vmatprep.mubr.f32.mxu0 0.0
    %984 = vmatmul.mubr.f32.gmra.mrb[0].mxu0 %v910
    %v985 = vpop.f32.mrb[0].mxu0
    %v986 = vadd.f32 %v398, %v985
    %v987 = vpop.f32.mrb[0].mxu0
    %v988 = vadd.f32 %v402, %v987
    %989 = vdwg.mxu0
    %990 = vmatprep.subr.mxu0 0.0
    %991 = vmatpush1.msra.mxu0 %v340
    %992 = vmatprep.subr.mxu0 0.0
    %993 = vmatpush1.msra.mxu0 %v343
    %994 = vmatprep.subr.mxu0 0.0
    %995 = vmatpush1.msra.mxu0 %v346
    %996 = vmatprep.subr.mxu0 0.0
    %997 = vmatpush1.msra.mxu0 %v349
    %998 = vmatprep.subr.mxu0 0.0
    %999 = vmatpush1.msra.mxu0 %v352
    %1000 = vmatprep.subr.mxu0 0.0
    %1001 = vmatpush1.msra.mxu0 %v355
    %1002 = vmatprep.subr.mxu0 0.0
    %1003 = vmatpush1.msra.mxu0 %v358
    %1004 = vmatprep.subr.mxu0 0.0
    %1005 = vmatpush1.msra.mxu0 %v361
    %1006 = vmatprep.subr.mxu0 0.0
    %1007 = vmatpush1.msra.mxu0 %v364
    %1008 = vmatprep.subr.mxu0 0.0
    %1009 = vmatpush1.msra.mxu0 %v367
    %1010 = vmatprep.subr.mxu0 0.0
    %1011 = vmatpush1.msra.mxu0 %v370
    %1012 = vmatprep.subr.mxu0 0.0
    %1013 = vmatpush1.msra.mxu0 %v373
    %1014 = vmatprep.subr.mxu0 0.0
    %1015 = vmatpush1.msra.mxu0 %v376
    %1016 = vmatprep.subr.mxu0 0.0
    %1017 = vmatpush1.msra.mxu0 %v379
    %1018 = vmatprep.subr.mxu0 0.0
    %1019 = vmatpush1.msra.mxu0 %v382
    %1020 = vmatprep.subr.mxu0 0.0
    %1021 = vmatpush1.msra.mxu0 %v385
    %1022 = vmatprep.subr.mxu0 0.0
    %1023 = vmatpush1.msra.mxu0 0.0
    %1024 = vmatprep.subr.mxu0 0.0
    %1025 = vmatpush1.msra.mxu0 0.0
    %1026 = vmatprep.subr.mxu0 0.0
    %1027 = vmatpush1.msra.mxu0 0.0
    %1028 = vmatprep.subr.mxu0 0.0
    %1029 = vmatpush1.msra.mxu0 0.0
    %1030 = vmatprep.subr.mxu0 0.0
    %1031 = vmatpush1.msra.mxu0 0.0
    %1032 = vmatprep.subr.mxu0 0.0
    %1033 = vmatpush1.msra.mxu0 0.0
    %1034 = vmatprep.subr.mxu0 0.0
    %1035 = vmatpush1.msra.mxu0 0.0
    %1036 = vmatprep.subr.mxu0 0.0
    %1037 = vmatpush1.msra.mxu0 0.0
    %1038 = vmatprep.subr.mxu0 0.0
    %1039 = vmatpush1.msra.mxu0 0.0
    %1040 = vmatprep.subr.mxu0 0.0
    %1041 = vmatpush1.msra.mxu0 0.0
    %1042 = vmatprep.subr.mxu0 0.0
    %1043 = vmatpush1.msra.mxu0 0.0
    %1044 = vmatprep.subr.mxu0 0.0
    %1045 = vmatpush1.msra.mxu0 0.0
    %1046 = vmatprep.subr.mxu0 0.0
    %1047 = vmatpush1.msra.mxu0 0.0
    %1048 = vmatprep.subr.mxu0 0.0
    %1049 = vmatpush1.msra.mxu0 0.0
    %1050 = vmatprep.subr.mxu0 0.0
    %1051 = vmatpush1.msra.mxu0 0.0
    %1052 = vmatprep.subr.mxu0 0.0
    %1053 = vmatpush1.msra.mxu0 0.0
    %1054 = vmatprep.mubr.f32.mxu0 0.0
    %1055 = vmatmul.mubr.f32.gmra.mrb[0].mxu0 %v910
    %v1056 = vpop.f32.mrb[0].mxu0
    %v1057 = vadd.f32 %v406, %v1056
    %v1058 = vpop.f32.mrb[0].mxu0
    %1059 = vdwg.mxu0
    %v1060 = vadd.f32 %v916, %v986
    %v1061 = vxor.u32 %v1060, 2147483648
    %v1062 = vmul.f32 %v1061, 1.442695
    %v1063 = vpow.pop %v1062
    %v1064 = vadd.f32 %v1063, 1.0
    %v1065 = vrcp.pop %v1064
    %v1066 = vmul.f32 1.0, %v1065
    %v1067 = vadd.f32 %v917, %v988
    %v1068 = vxor.u32 %v1067, 2147483648
    %v1069 = vmul.f32 %v1068, 1.442695
    %v1070 = vpow.pop %v1069
    %v1071 = vadd.f32 %v1070, 1.0
    %v1072 = vrcp.pop %v1071
    %v1073 = vmul.f32 1.0, %v1072
    %v1074 = vmul.f32 %v1066, %v1057
    %v1075 = vadd.f32 %v918, %v1074
    %v1076 = vtanh.pop %v1075
    %v1077 = vsub.f32 1.0, %v1073
    %v1078 = vmul.f32 %v1077, %v1076
    %v1079 = vmul.f32 %v1073, %v910
    %v1080 = vadd.f32 %v1078, %v1079
    %s1081 = scalar_lea.vmem [#allocation7], 24
    %1082 = vst [vmem:[%s1081] sm:$0xff] %v1080
    %s1083 = smul.u32 4, 3
    %s1084 = smul.addr %s1083, 8
    %s1085 = scalar_lea.vmem [#allocation3], %s1084
    %v1086 = vld [vmem:[%s1085] sm:$0xff]
    %v1087 = vld [vmem:[%s1085 + $0x8] sm:$0xff]
    %v1088 = vld [vmem:[%s1085 + $0x10] sm:$0xff]
    %1089 = vmatprep.subr.mxu0 %v339
    %1090 = vmatpush1.msra.mxu0 %v338
    %1091 = vmatprep.subr.mxu0 %v342
    %1092 = vmatpush1.msra.mxu0 %v341
    %1093 = vmatprep.subr.mxu0 %v345
    %1094 = vmatpush1.msra.mxu0 %v344
    %1095 = vmatprep.subr.mxu0 %v348
    %1096 = vmatpush1.msra.mxu0 %v347
    %1097 = vmatprep.subr.mxu0 %v351
    %1098 = vmatpush1.msra.mxu0 %v350
    %1099 = vmatprep.subr.mxu0 %v354
    %1100 = vmatpush1.msra.mxu0 %v353
    %1101 = vmatprep.subr.mxu0 %v357
    %1102 = vmatpush1.msra.mxu0 %v356
    %1103 = vmatprep.subr.mxu0 %v360
    %1104 = vmatpush1.msra.mxu0 %v359
    %1105 = vmatprep.subr.mxu0 %v363
    %1106 = vmatpush1.msra.mxu0 %v362
    %1107 = vmatprep.subr.mxu0 %v366
    %1108 = vmatpush1.msra.mxu0 %v365
    %1109 = vmatprep.subr.mxu0 %v369
    %1110 = vmatpush1.msra.mxu0 %v368
    %1111 = vmatprep.subr.mxu0 %v372
    %1112 = vmatpush1.msra.mxu0 %v371
    %1113 = vmatprep.subr.mxu0 %v375
    %1114 = vmatpush1.msra.mxu0 %v374
    %1115 = vmatprep.subr.mxu0 %v378
    %1116 = vmatpush1.msra.mxu0 %v377
    %1117 = vmatprep.subr.mxu0 %v381
    %1118 = vmatpush1.msra.mxu0 %v380
    %1119 = vmatprep.subr.mxu0 %v384
    %1120 = vmatpush1.msra.mxu0 %v383
    %1121 = vmatprep.subr.mxu0 0.0
    %1122 = vmatpush1.msra.mxu0 0.0
    %1123 = vmatprep.subr.mxu0 0.0
    %1124 = vmatpush1.msra.mxu0 0.0
    %1125 = vmatprep.subr.mxu0 0.0
    %1126 = vmatpush1.msra.mxu0 0.0
    %1127 = vmatprep.subr.mxu0 0.0
    %1128 = vmatpush1.msra.mxu0 0.0
    %1129 = vmatprep.subr.mxu0 0.0
    %1130 = vmatpush1.msra.mxu0 0.0
    %1131 = vmatprep.subr.mxu0 0.0
    %1132 = vmatpush1.msra.mxu0 0.0
    %1133 = vmatprep.subr.mxu0 0.0
    %1134 = vmatpush1.msra.mxu0 0.0
    %1135 = vmatprep.subr.mxu0 0.0
    %1136 = vmatpush1.msra.mxu0 0.0
    %1137 = vmatprep.subr.mxu0 0.0
    %1138 = vmatpush1.msra.mxu0 0.0
    %1139 = vmatprep.subr.mxu0 0.0
    %1140 = vmatpush1.msra.mxu0 0.0
    %1141 = vmatprep.subr.mxu0 0.0
    %1142 = vmatpush1.msra.mxu0 0.0
    %1143 = vmatprep.subr.mxu0 0.0
    %1144 = vmatpush1.msra.mxu0 0.0
    %1145 = vmatprep.subr.mxu0 0.0
    %1146 = vmatpush1.msra.mxu0 0.0
    %1147 = vmatprep.subr.mxu0 0.0
    %1148 = vmatpush1.msra.mxu0 0.0
    %1149 = vmatprep.subr.mxu0 0.0
    %1150 = vmatpush1.msra.mxu0 0.0
    %1151 = vmatprep.subr.mxu0 0.0
    %1152 = vmatpush1.msra.mxu0 0.0
    %1153 = vmatprep.mubr.f32.mxu0 0.0
    %1154 = vmatmul.mubr.f32.gmra.mrb[0].mxu0 %v1080
    %v1155 = vpop.f32.mrb[0].mxu0
    %v1156 = vadd.f32 %v398, %v1155
    %v1157 = vpop.f32.mrb[0].mxu0
    %v1158 = vadd.f32 %v402, %v1157
    %1159 = vdwg.mxu0
    %1160 = vmatprep.subr.mxu0 0.0
    %1161 = vmatpush1.msra.mxu0 %v340
    %1162 = vmatprep.subr.mxu0 0.0
    %1163 = vmatpush1.msra.mxu0 %v343
    %1164 = vmatprep.subr.mxu0 0.0
    %1165 = vmatpush1.msra.mxu0 %v346
    %1166 = vmatprep.subr.mxu0 0.0
    %1167 = vmatpush1.msra.mxu0 %v349
    %1168 = vmatprep.subr.mxu0 0.0
    %1169 = vmatpush1.msra.mxu0 %v352
    %1170 = vmatprep.subr.mxu0 0.0
    %1171 = vmatpush1.msra.mxu0 %v355
    %1172 = vmatprep.subr.mxu0 0.0
    %1173 = vmatpush1.msra.mxu0 %v358
    %1174 = vmatprep.subr.mxu0 0.0
    %1175 = vmatpush1.msra.mxu0 %v361
    %1176 = vmatprep.subr.mxu0 0.0
    %1177 = vmatpush1.msra.mxu0 %v364
    %1178 = vmatprep.subr.mxu0 0.0
    %1179 = vmatpush1.msra.mxu0 %v367
    %1180 = vmatprep.subr.mxu0 0.0
    %1181 = vmatpush1.msra.mxu0 %v370
    %1182 = vmatprep.subr.mxu0 0.0
    %1183 = vmatpush1.msra.mxu0 %v373
    %1184 = vmatprep.subr.mxu0 0.0
    %1185 = vmatpush1.msra.mxu0 %v376
    %1186 = vmatprep.subr.mxu0 0.0
    %1187 = vmatpush1.msra.mxu0 %v379
    %1188 = vmatprep.subr.mxu0 0.0
    %1189 = vmatpush1.msra.mxu0 %v382
    %1190 = vmatprep.subr.mxu0 0.0
    %1191 = vmatpush1.msra.mxu0 %v385
    %1192 = vmatprep.subr.mxu0 0.0
    %1193 = vmatpush1.msra.mxu0 0.0
    %1194 = vmatprep.subr.mxu0 0.0
    %1195 = vmatpush1.msra.mxu0 0.0
    %1196 = vmatprep.subr.mxu0 0.0
    %1197 = vmatpush1.msra.mxu0 0.0
    %1198 = vmatprep.subr.mxu0 0.0
    %1199 = vmatpush1.msra.mxu0 0.0
    %1200 = vmatprep.subr.mxu0 0.0
    %1201 = vmatpush1.msra.mxu0 0.0
    %1202 = vmatprep.subr.mxu0 0.0
    %1203 = vmatpush1.msra.mxu0 0.0
    %1204 = vmatprep.subr.mxu0 0.0
    %1205 = vmatpush1.msra.mxu0 0.0
    %1206 = vmatprep.subr.mxu0 0.0
    %1207 = vmatpush1.msra.mxu0 0.0
    %1208 = vmatprep.subr.mxu0 0.0
    %1209 = vmatpush1.msra.mxu0 0.0
    %1210 = vmatprep.subr.mxu0 0.0
    %1211 = vmatpush1.msra.mxu0 0.0
    %1212 = vmatprep.subr.mxu0 0.0
    %1213 = vmatpush1.msra.mxu0 0.0
    %1214 = vmatprep.subr.mxu0 0.0
    %1215 = vmatpush1.msra.mxu0 0.0
    %1216 = vmatprep.subr.mxu0 0.0
    %1217 = vmatpush1.msra.mxu0 0.0
    %1218 = vmatprep.subr.mxu0 0.0
    %1219 = vmatpush1.msra.mxu0 0.0
    %1220 = vmatprep.subr.mxu0 0.0
    %1221 = vmatpush1.msra.mxu0 0.0
    %1222 = vmatprep.subr.mxu0 0.0
    %1223 = vmatpush1.msra.mxu0 0.0
    %1224 = vmatprep.mubr.f32.mxu0 0.0
    %1225 = vmatmul.mubr.f32.gmra.mrb[0].mxu0 %v1080
    %v1226 = vpop.f32.mrb[0].mxu0
    %v1227 = vadd.f32 %v406, %v1226
    %v1228 = vpop.f32.mrb[0].mxu0
    %1229 = vdwg.mxu0
    %v1230 = vadd.f32 %v1086, %v1156
    %v1231 = vxor.u32 %v1230, 2147483648
    %v1232 = vmul.f32 %v1231, 1.442695
    %v1233 = vpow.pop %v1232
    %v1234 = vadd.f32 %v1233, 1.0
    %v1235 = vrcp.pop %v1234
    %v1236 = vmul.f32 1.0, %v1235
    %v1237 = vadd.f32 %v1087, %v1158
    %v1238 = vxor.u32 %v1237, 2147483648
    %v1239 = vmul.f32 %v1238, 1.442695
    %v1240 = vpow.pop %v1239
    %v1241 = vadd.f32 %v1240, 1.0
    %v1242 = vrcp.pop %v1241
    %v1243 = vmul.f32 1.0, %v1242
    %v1244 = vmul.f32 %v1236, %v1227
    %v1245 = vadd.f32 %v1088, %v1244
    %v1246 = vtanh.pop %v1245
    %v1247 = vsub.f32 1.0, %v1243
    %v1248 = vmul.f32 %v1247, %v1246
    %v1249 = vmul.f32 %v1243, %v1080
    %v1250 = vadd.f32 %v1248, %v1249
    %s1251 = scalar_lea.vmem [#allocation7], 32
    %1252 = vst [vmem:[%s1251] sm:$0xff] %v1250
    %s1253 = smul.u32 5, 3
    %s1254 = smul.addr %s1253, 8
    %s1255 = scalar_lea.vmem [#allocation3], %s1254
    %v1256 = vld [vmem:[%s1255] sm:$0xff]
    %v1257 = vld [vmem:[%s1255 + $0x8] sm:$0xff]
    %v1258 = vld [vmem:[%s1255 + $0x10] sm:$0xff]
    %1259 = vmatprep.subr.mxu0 %v339
    %1260 = vmatpush1.msra.mxu0 %v338
    %1261 = vmatprep.subr.mxu0 %v342
    %1262 = vmatpush1.msra.mxu0 %v341
    %1263 = vmatprep.subr.mxu0 %v345
    %1264 = vmatpush1.msra.mxu0 %v344
    %1265 = vmatprep.subr.mxu0 %v348
    %1266 = vmatpush1.msra.mxu0 %v347
    %1267 = vmatprep.subr.mxu0 %v351
    %1268 = vmatpush1.msra.mxu0 %v350
    %1269 = vmatprep.subr.mxu0 %v354
    %1270 = vmatpush1.msra.mxu0 %v353
    %1271 = vmatprep.subr.mxu0 %v357
    %1272 = vmatpush1.msra.mxu0 %v356
    %1273 = vmatprep.subr.mxu0 %v360
    %1274 = vmatpush1.msra.mxu0 %v359
    %1275 = vmatprep.subr.mxu0 %v363
    %1276 = vmatpush1.msra.mxu0 %v362
    %1277 = vmatprep.subr.mxu0 %v366
    %1278 = vmatpush1.msra.mxu0 %v365
    %1279 = vmatprep.subr.mxu0 %v369
    %1280 = vmatpush1.msra.mxu0 %v368
    %1281 = vmatprep.subr.mxu0 %v372
    %1282 = vmatpush1.msra.mxu0 %v371
    %1283 = vmatprep.subr.mxu0 %v375
    %1284 = vmatpush1.msra.mxu0 %v374
    %1285 = vmatprep.subr.mxu0 %v378
    %1286 = vmatpush1.msra.mxu0 %v377
    %1287 = vmatprep.subr.mxu0 %v381
    %1288 = vmatpush1.msra.mxu0 %v380
    %1289 = vmatprep.subr.mxu0 %v384
    %1290 = vmatpush1.msra.mxu0 %v383
    %1291 = vmatprep.subr.mxu0 0.0
    %1292 = vmatpush1.msra.mxu0 0.0
    %1293 = vmatprep.subr.mxu0 0.0
    %1294 = vmatpush1.msra.mxu0 0.0
    %1295 = vmatprep.subr.mxu0 0.0
    %1296 = vmatpush1.msra.mxu0 0.0
    %1297 = vmatprep.subr.mxu0 0.0
    %1298 = vmatpush1.msra.mxu0 0.0
    %1299 = vmatprep.subr.mxu0 0.0
    %1300 = vmatpush1.msra.mxu0 0.0
    %1301 = vmatprep.subr.mxu0 0.0
    %1302 = vmatpush1.msra.mxu0 0.0
    %1303 = vmatprep.subr.mxu0 0.0
    %1304 = vmatpush1.msra.mxu0 0.0
    %1305 = vmatprep.subr.mxu0 0.0
    %1306 = vmatpush1.msra.mxu0 0.0
    %1307 = vmatprep.subr.mxu0 0.0
    %1308 = vmatpush1.msra.mxu0 0.0
    %1309 = vmatprep.subr.mxu0 0.0
    %1310 = vmatpush1.msra.mxu0 0.0
    %1311 = vmatprep.subr.mxu0 0.0
    %1312 = vmatpush1.msra.mxu0 0.0
    %1313 = vmatprep.subr.mxu0 0.0
    %1314 = vmatpush1.msra.mxu0 0.0
    %1315 = vmatprep.subr.mxu0 0.0
    %1316 = vmatpush1.msra.mxu0 0.0
    %1317 = vmatprep.subr.mxu0 0.0
    %1318 = vmatpush1.msra.mxu0 0.0
    %1319 = vmatprep.subr.mxu0 0.0
    %1320 = vmatpush1.msra.mxu0 0.0
    %1321 = vmatprep.subr.mxu0 0.0
    %1322 = vmatpush1.msra.mxu0 0.0
    %1323 = vmatprep.mubr.f32.mxu0 0.0
    %1324 = vmatmul.mubr.f32.gmra.mrb[0].mxu0 %v1250
    %v1325 = vpop.f32.mrb[0].mxu0
    %v1326 = vadd.f32 %v398, %v1325
    %v1327 = vpop.f32.mrb[0].mxu0
    %v1328 = vadd.f32 %v402, %v1327
    %1329 = vdwg.mxu0
    %1330 = vmatprep.subr.mxu0 0.0
    %1331 = vmatpush1.msra.mxu0 %v340
    %1332 = vmatprep.subr.mxu0 0.0
    %1333 = vmatpush1.msra.mxu0 %v343
    %1334 = vmatprep.subr.mxu0 0.0
    %1335 = vmatpush1.msra.mxu0 %v346
    %1336 = vmatprep.subr.mxu0 0.0
    %1337 = vmatpush1.msra.mxu0 %v349
    %1338 = vmatprep.subr.mxu0 0.0
    %1339 = vmatpush1.msra.mxu0 %v352
    %1340 = vmatprep.subr.mxu0 0.0
    %1341 = vmatpush1.msra.mxu0 %v355
    %1342 = vmatprep.subr.mxu0 0.0
    %1343 = vmatpush1.msra.mxu0 %v358
    %1344 = vmatprep.subr.mxu0 0.0
    %1345 = vmatpush1.msra.mxu0 %v361
    %1346 = vmatprep.subr.mxu0 0.0
    %1347 = vmatpush1.msra.mxu0 %v364
    %1348 = vmatprep.subr.mxu0 0.0
    %1349 = vmatpush1.msra.mxu0 %v367
    %1350 = vmatprep.subr.mxu0 0.0
    %1351 = vmatpush1.msra.mxu0 %v370
    %1352 = vmatprep.subr.mxu0 0.0
    %1353 = vmatpush1.msra.mxu0 %v373
    %1354 = vmatprep.subr.mxu0 0.0
    %1355 = vmatpush1.msra.mxu0 %v376
    %1356 = vmatprep.subr.mxu0 0.0
    %1357 = vmatpush1.msra.mxu0 %v379
    %1358 = vmatprep.subr.mxu0 0.0
    %1359 = vmatpush1.msra.mxu0 %v382
    %1360 = vmatprep.subr.mxu0 0.0
    %1361 = vmatpush1.msra.mxu0 %v385
    %1362 = vmatprep.subr.mxu0 0.0
    %1363 = vmatpush1.msra.mxu0 0.0
    %1364 = vmatprep.subr.mxu0 0.0
    %1365 = vmatpush1.msra.mxu0 0.0
    %1366 = vmatprep.subr.mxu0 0.0
    %1367 = vmatpush1.msra.mxu0 0.0
    %1368 = vmatprep.subr.mxu0 0.0
    %1369 = vmatpush1.msra.mxu0 0.0
    %1370 = vmatprep.subr.mxu0 0.0
    %1371 = vmatpush1.msra.mxu0 0.0
    %1372 = vmatprep.subr.mxu0 0.0
    %1373 = vmatpush1.msra.mxu0 0.0
    %1374 = vmatprep.subr.mxu0 0.0
    %1375 = vmatpush1.msra.mxu0 0.0
    %1376 = vmatprep.subr.mxu0 0.0
    %1377 = vmatpush1.msra.mxu0 0.0
    %1378 = vmatprep.subr.mxu0 0.0
    %1379 = vmatpush1.msra.mxu0 0.0
    %1380 = vmatprep.subr.mxu0 0.0
    %1381 = vmatpush1.msra.mxu0 0.0
    %1382 = vmatprep.subr.mxu0 0.0
    %1383 = vmatpush1.msra.mxu0 0.0
    %1384 = vmatprep.subr.mxu0 0.0
    %1385 = vmatpush1.msra.mxu0 0.0
    %1386 = vmatprep.subr.mxu0 0.0
    %1387 = vmatpush1.msra.mxu0 0.0
    %1388 = vmatprep.subr.mxu0 0.0
    %1389 = vmatpush1.msra.mxu0 0.0
    %1390 = vmatprep.subr.mxu0 0.0
    %1391 = vmatpush1.msra.mxu0 0.0
    %1392 = vmatprep.subr.mxu0 0.0
    %1393 = vmatpush1.msra.mxu0 0.0
    %1394 = vmatprep.mubr.f32.mxu0 0.0
    %1395 = vmatmul.mubr.f32.gmra.mrb[0].mxu0 %v1250
    %v1396 = vpop.f32.mrb[0].mxu0
    %v1397 = vadd.f32 %v406, %v1396
    %v1398 = vpop.f32.mrb[0].mxu0
    %1399 = vdwg.mxu0
    %v1400 = vadd.f32 %v1256, %v1326
    %v1401 = vxor.u32 %v1400, 2147483648
    %v1402 = vmul.f32 %v1401, 1.442695
    %v1403 = vpow.pop %v1402
    %v1404 = vadd.f32 %v1403, 1.0
    %v1405 = vrcp.pop %v1404
    %v1406 = vmul.f32 1.0, %v1405
    %v1407 = vadd.f32 %v1257, %v1328
    %v1408 = vxor.u32 %v1407, 2147483648
    %v1409 = vmul.f32 %v1408, 1.442695
    %v1410 = vpow.pop %v1409
    %v1411 = vadd.f32 %v1410, 1.0
    %v1412 = vrcp.pop %v1411
    %v1413 = vmul.f32 1.0, %v1412
    %v1414 = vmul.f32 %v1406, %v1397
    %v1415 = vadd.f32 %v1258, %v1414
    %v1416 = vtanh.pop %v1415
    %v1417 = vsub.f32 1.0, %v1413
    %v1418 = vmul.f32 %v1417, %v1416
    %v1419 = vmul.f32 %v1413, %v1250
    %v1420 = vadd.f32 %v1418, %v1419
    %s1421 = scalar_lea.vmem [#allocation7], 40
    %1422 = vst [vmem:[%s1421] sm:$0xff] %v1420
    %s1423 = smul.u32 6, 3
    %s1424 = smul.addr %s1423, 8
    %s1425 = scalar_lea.vmem [#allocation3], %s1424
    %v1426 = vld [vmem:[%s1425] sm:$0xff]
    %v1427 = vld [vmem:[%s1425 + $0x8] sm:$0xff]
    %v1428 = vld [vmem:[%s1425 + $0x10] sm:$0xff]
    %1429 = vmatprep.subr.mxu0 %v339
    %1430 = vmatpush1.msra.mxu0 %v338
    %1431 = vmatprep.subr.mxu0 %v342
    %1432 = vmatpush1.msra.mxu0 %v341
    %1433 = vmatprep.subr.mxu0 %v345
    %1434 = vmatpush1.msra.mxu0 %v344
    %1435 = vmatprep.subr.mxu0 %v348
    %1436 = vmatpush1.msra.mxu0 %v347
    %1437 = vmatprep.subr.mxu0 %v351
    %1438 = vmatpush1.msra.mxu0 %v350
    %1439 = vmatprep.subr.mxu0 %v354
    %1440 = vmatpush1.msra.mxu0 %v353
    %1441 = vmatprep.subr.mxu0 %v357
    %1442 = vmatpush1.msra.mxu0 %v356
    %1443 = vmatprep.subr.mxu0 %v360
    %1444 = vmatpush1.msra.mxu0 %v359
    %1445 = vmatprep.subr.mxu0 %v363
    %1446 = vmatpush1.msra.mxu0 %v362
    %1447 = vmatprep.subr.mxu0 %v366
    %1448 = vmatpush1.msra.mxu0 %v365
    %1449 = vmatprep.subr.mxu0 %v369
    %1450 = vmatpush1.msra.mxu0 %v368
    %1451 = vmatprep.subr.mxu0 %v372
    %1452 = vmatpush1.msra.mxu0 %v371
    %1453 = vmatprep.subr.mxu0 %v375
    %1454 = vmatpush1.msra.mxu0 %v374
    %1455 = vmatprep.subr.mxu0 %v378
    %1456 = vmatpush1.msra.mxu0 %v377
    %1457 = vmatprep.subr.mxu0 %v381
    %1458 = vmatpush1.msra.mxu0 %v380
    %1459 = vmatprep.subr.mxu0 %v384
    %1460 = vmatpush1.msra.mxu0 %v383
    %1461 = vmatprep.subr.mxu0 0.0
    %1462 = vmatpush1.msra.mxu0 0.0
    %1463 = vmatprep.subr.mxu0 0.0
    %1464 = vmatpush1.msra.mxu0 0.0
    %1465 = vmatprep.subr.mxu0 0.0
    %1466 = vmatpush1.msra.mxu0 0.0
    %1467 = vmatprep.subr.mxu0 0.0
    %1468 = vmatpush1.msra.mxu0 0.0
    %1469 = vmatprep.subr.mxu0 0.0
    %1470 = vmatpush1.msra.mxu0 0.0
    %1471 = vmatprep.subr.mxu0 0.0
    %1472 = vmatpush1.msra.mxu0 0.0
    %1473 = vmatprep.subr.mxu0 0.0
    %1474 = vmatpush1.msra.mxu0 0.0
    %1475 = vmatprep.subr.mxu0 0.0
    %1476 = vmatpush1.msra.mxu0 0.0
    %1477 = vmatprep.subr.mxu0 0.0
    %1478 = vmatpush1.msra.mxu0 0.0
    %1479 = vmatprep.subr.mxu0 0.0
    %1480 = vmatpush1.msra.mxu0 0.0
    %1481 = vmatprep.subr.mxu0 0.0
    %1482 = vmatpush1.msra.mxu0 0.0
    %1483 = vmatprep.subr.mxu0 0.0
    %1484 = vmatpush1.msra.mxu0 0.0
    %1485 = vmatprep.subr.mxu0 0.0
    %1486 = vmatpush1.msra.mxu0 0.0
    %1487 = vmatprep.subr.mxu0 0.0
    %1488 = vmatpush1.msra.mxu0 0.0
    %1489 = vmatprep.subr.mxu0 0.0
    %1490 = vmatpush1.msra.mxu0 0.0
    %1491 = vmatprep.subr.mxu0 0.0
    %1492 = vmatpush1.msra.mxu0 0.0
    %1493 = vmatprep.mubr.f32.mxu0 0.0
    %1494 = vmatmul.mubr.f32.gmra.mrb[0].mxu0 %v1420
    %v1495 = vpop.f32.mrb[0].mxu0
    %v1496 = vadd.f32 %v398, %v1495
    %v1497 = vpop.f32.mrb[0].mxu0
    %v1498 = vadd.f32 %v402, %v1497
    %1499 = vdwg.mxu0
    %1500 = vmatprep.subr.mxu0 0.0
    %1501 = vmatpush1.msra.mxu0 %v340
    %1502 = vmatprep.subr.mxu0 0.0
    %1503 = vmatpush1.msra.mxu0 %v343
    %1504 = vmatprep.subr.mxu0 0.0
    %1505 = vmatpush1.msra.mxu0 %v346
    %1506 = vmatprep.subr.mxu0 0.0
    %1507 = vmatpush1.msra.mxu0 %v349
    %1508 = vmatprep.subr.mxu0 0.0
    %1509 = vmatpush1.msra.mxu0 %v352
    %1510 = vmatprep.subr.mxu0 0.0
    %1511 = vmatpush1.msra.mxu0 %v355
    %1512 = vmatprep.subr.mxu0 0.0
    %1513 = vmatpush1.msra.mxu0 %v358
    %1514 = vmatprep.subr.mxu0 0.0
    %1515 = vmatpush1.msra.mxu0 %v361
    %1516 = vmatprep.subr.mxu0 0.0
    %1517 = vmatpush1.msra.mxu0 %v364
    %1518 = vmatprep.subr.mxu0 0.0
    %1519 = vmatpush1.msra.mxu0 %v367
    %1520 = vmatprep.subr.mxu0 0.0
    %1521 = vmatpush1.msra.mxu0 %v370
    %1522 = vmatprep.subr.mxu0 0.0
    %1523 = vmatpush1.msra.mxu0 %v373
    %1524 = vmatprep.subr.mxu0 0.0
    %1525 = vmatpush1.msra.mxu0 %v376
    %1526 = vmatprep.subr.mxu0 0.0
    %1527 = vmatpush1.msra.mxu0 %v379
    %1528 = vmatprep.subr.mxu0 0.0
    %1529 = vmatpush1.msra.mxu0 %v382
    %1530 = vmatprep.subr.mxu0 0.0
    %1531 = vmatpush1.msra.mxu0 %v385
    %1532 = vmatprep.subr.mxu0 0.0
    %1533 = vmatpush1.msra.mxu0 0.0
    %1534 = vmatprep.subr.mxu0 0.0
    %1535 = vmatpush1.msra.mxu0 0.0
    %1536 = vmatprep.subr.mxu0 0.0
    %1537 = vmatpush1.msra.mxu0 0.0
    %1538 = vmatprep.subr.mxu0 0.0
    %1539 = vmatpush1.msra.mxu0 0.0
    %1540 = vmatprep.subr.mxu0 0.0
    %1541 = vmatpush1.msra.mxu0 0.0
    %1542 = vmatprep.subr.mxu0 0.0
    %1543 = vmatpush1.msra.mxu0 0.0
    %1544 = vmatprep.subr.mxu0 0.0
    %1545 = vmatpush1.msra.mxu0 0.0
    %1546 = vmatprep.subr.mxu0 0.0
    %1547 = vmatpush1.msra.mxu0 0.0
    %1548 = vmatprep.subr.mxu0 0.0
    %1549 = vmatpush1.msra.mxu0 0.0
    %1550 = vmatprep.subr.mxu0 0.0
    %1551 = vmatpush1.msra.mxu0 0.0
    %1552 = vmatprep.subr.mxu0 0.0
    %1553 = vmatpush1.msra.mxu0 0.0
    %1554 = vmatprep.subr.mxu0 0.0
    %1555 = vmatpush1.msra.mxu0 0.0
    %1556 = vmatprep.subr.mxu0 0.0
    %1557 = vmatpush1.msra.mxu0 0.0
    %1558 = vmatprep.subr.mxu0 0.0
    %1559 = vmatpush1.msra.mxu0 0.0
    %1560 = vmatprep.subr.mxu0 0.0
    %1561 = vmatpush1.msra.mxu0 0.0
    %1562 = vmatprep.subr.mxu0 0.0
    %1563 = vmatpush1.msra.mxu0 0.0
    %1564 = vmatprep.mubr.f32.mxu0 0.0
    %1565 = vmatmul.mubr.f32.gmra.mrb[0].mxu0 %v1420
    %v1566 = vpop.f32.mrb[0].mxu0
    %v1567 = vadd.f32 %v406, %v1566
    %v1568 = vpop.f32.mrb[0].mxu0
    %1569 = vdwg.mxu0
    %v1570 = vadd.f32 %v1426, %v1496
    %v1571 = vxor.u32 %v1570, 2147483648
    %v1572 = vmul.f32 %v1571, 1.442695
    %v1573 = vpow.pop %v1572
    %v1574 = vadd.f32 %v1573, 1.0
    %v1575 = vrcp.pop %v1574
    %v1576 = vmul.f32 1.0, %v1575
    %v1577 = vadd.f32 %v1427, %v1498
    %v1578 = vxor.u32 %v1577, 2147483648
    %v1579 = vmul.f32 %v1578, 1.442695
    %v1580 = vpow.pop %v1579
    %v1581 = vadd.f32 %v1580, 1.0
    %v1582 = vrcp.pop %v1581
    %v1583 = vmul.f32 1.0, %v1582
    %v1584 = vmul.f32 %v1576, %v1567
    %v1585 = vadd.f32 %v1428, %v1584
    %v1586 = vtanh.pop %v1585
    %v1587 = vsub.f32 1.0, %v1583
    %v1588 = vmul.f32 %v1587, %v1586
    %v1589 = vmul.f32 %v1583, %v1420
    %v1590 = vadd.f32 %v1588, %v1589
    %s1591 = scalar_lea.vmem [#allocation7], 48
    %1592 = vst [vmem:[%s1591] sm:$0xff] %v1590
    %s1593 = smul.u32 7, 3
    %s1594 = smul.addr %s1593, 8
    %s1595 = scalar_lea.vmem [#allocation3], %s1594
    %v1596 = vld [vmem:[%s1595] sm:$0xff]
    %v1597 = vld [vmem:[%s1595 + $0x8] sm:$0xff]
    %v1598 = vld [vmem:[%s1595 + $0x10] sm:$0xff]
    %1599 = vmatprep.subr.mxu0 %v339
    %1600 = vmatpush1.msra.mxu0 %v338
    %1601 = vmatprep.subr.mxu0 %v342
    %1602 = vmatpush1.msra.mxu0 %v341
    %1603 = vmatprep.subr.mxu0 %v345
    %1604 = vmatpush1.msra.mxu0 %v344
    %1605 = vmatprep.subr.mxu0 %v348
    %1606 = vmatpush1.msra.mxu0 %v347
    %1607 = vmatprep.subr.mxu0 %v351
    %1608 = vmatpush1.msra.mxu0 %v350
    %1609 = vmatprep.subr.mxu0 %v354
    %1610 = vmatpush1.msra.mxu0 %v353
    %1611 = vmatprep.subr.mxu0 %v357
    %1612 = vmatpush1.msra.mxu0 %v356
    %1613 = vmatprep.subr.mxu0 %v360
    %1614 = vmatpush1.msra.mxu0 %v359
    %1615 = vmatprep.subr.mxu0 %v363
    %1616 = vmatpush1.msra.mxu0 %v362
    %1617 = vmatprep.subr.mxu0 %v366
    %1618 = vmatpush1.msra.mxu0 %v365
    %1619 = vmatprep.subr.mxu0 %v369
    %1620 = vmatpush1.msra.mxu0 %v368
    %1621 = vmatprep.subr.mxu0 %v372
    %1622 = vmatpush1.msra.mxu0 %v371
    %1623 = vmatprep.subr.mxu0 %v375
    %1624 = vmatpush1.msra.mxu0 %v374
    %1625 = vmatprep.subr.mxu0 %v378
    %1626 = vmatpush1.msra.mxu0 %v377
    %1627 = vmatprep.subr.mxu0 %v381
    %1628 = vmatpush1.msra.mxu0 %v380
    %1629 = vmatprep.subr.mxu0 %v384
    %1630 = vmatpush1.msra.mxu0 %v383
    %1631 = vmatprep.subr.mxu0 0.0
    %1632 = vmatpush1.msra.mxu0 0.0
    %1633 = vmatprep.subr.mxu0 0.0
    %1634 = vmatpush1.msra.mxu0 0.0
    %1635 = vmatprep.subr.mxu0 0.0
    %1636 = vmatpush1.msra.mxu0 0.0
    %1637 = vmatprep.subr.mxu0 0.0
    %1638 = vmatpush1.msra.mxu0 0.0
    %1639 = vmatprep.subr.mxu0 0.0
    %1640 = vmatpush1.msra.mxu0 0.0
    %1641 = vmatprep.subr.mxu0 0.0
    %1642 = vmatpush1.msra.mxu0 0.0
    %1643 = vmatprep.subr.mxu0 0.0
    %1644 = vmatpush1.msra.mxu0 0.0
    %1645 = vmatprep.subr.mxu0 0.0
    %1646 = vmatpush1.msra.mxu0 0.0
    %1647 = vmatprep.subr.mxu0 0.0
    %1648 = vmatpush1.msra.mxu0 0.0
    %1649 = vmatprep.subr.mxu0 0.0
    %1650 = vmatpush1.msra.mxu0 0.0
    %1651 = vmatprep.subr.mxu0 0.0
    %1652 = vmatpush1.msra.mxu0 0.0
    %1653 = vmatprep.subr.mxu0 0.0
    %1654 = vmatpush1.msra.mxu0 0.0
    %1655 = vmatprep.subr.mxu0 0.0
    %1656 = vmatpush1.msra.mxu0 0.0
    %1657 = vmatprep.subr.mxu0 0.0
    %1658 = vmatpush1.msra.mxu0 0.0
    %1659 = vmatprep.subr.mxu0 0.0
    %1660 = vmatpush1.msra.mxu0 0.0
    %1661 = vmatprep.subr.mxu0 0.0
    %1662 = vmatpush1.msra.mxu0 0.0
    %1663 = vmatprep.mubr.f32.mxu0 0.0
    %1664 = vmatmul.mubr.f32.gmra.mrb[0].mxu0 %v1590
    %v1665 = vpop.f32.mrb[0].mxu0
    %v1666 = vadd.f32 %v398, %v1665
    %v1667 = vpop.f32.mrb[0].mxu0
    %v1668 = vadd.f32 %v402, %v1667
    %1669 = vdwg.mxu0
    %1670 = vmatprep.subr.mxu0 0.0
    %1671 = vmatpush1.msra.mxu0 %v340
    %1672 = vmatprep.subr.mxu0 0.0
    %1673 = vmatpush1.msra.mxu0 %v343
    %1674 = vmatprep.subr.mxu0 0.0
    %1675 = vmatpush1.msra.mxu0 %v346
    %1676 = vmatprep.subr.mxu0 0.0
    %1677 = vmatpush1.msra.mxu0 %v349
    %1678 = vmatprep.subr.mxu0 0.0
    %1679 = vmatpush1.msra.mxu0 %v352
    %1680 = vmatprep.subr.mxu0 0.0
    %1681 = vmatpush1.msra.mxu0 %v355
    %1682 = vmatprep.subr.mxu0 0.0
    %1683 = vmatpush1.msra.mxu0 %v358
    %1684 = vmatprep.subr.mxu0 0.0
    %1685 = vmatpush1.msra.mxu0 %v361
    %1686 = vmatprep.subr.mxu0 0.0
    %1687 = vmatpush1.msra.mxu0 %v364
    %1688 = vmatprep.subr.mxu0 0.0
    %1689 = vmatpush1.msra.mxu0 %v367
    %1690 = vmatprep.subr.mxu0 0.0
    %1691 = vmatpush1.msra.mxu0 %v370
    %1692 = vmatprep.subr.mxu0 0.0
    %1693 = vmatpush1.msra.mxu0 %v373
    %1694 = vmatprep.subr.mxu0 0.0
    %1695 = vmatpush1.msra.mxu0 %v376
    %1696 = vmatprep.subr.mxu0 0.0
    %1697 = vmatpush1.msra.mxu0 %v379
    %1698 = vmatprep.subr.mxu0 0.0
    %1699 = vmatpush1.msra.mxu0 %v382
    %1700 = vmatprep.subr.mxu0 0.0
    %1701 = vmatpush1.msra.mxu0 %v385
    %1702 = vmatprep.subr.mxu0 0.0
    %1703 = vmatpush1.msra.mxu0 0.0
    %1704 = vmatprep.subr.mxu0 0.0
    %1705 = vmatpush1.msra.mxu0 0.0
    %1706 = vmatprep.subr.mxu0 0.0
    %1707 = vmatpush1.msra.mxu0 0.0
    %1708 = vmatprep.subr.mxu0 0.0
    %1709 = vmatpush1.msra.mxu0 0.0
    %1710 = vmatprep.subr.mxu0 0.0
    %1711 = vmatpush1.msra.mxu0 0.0
    %1712 = vmatprep.subr.mxu0 0.0
    %1713 = vmatpush1.msra.mxu0 0.0
    %1714 = vmatprep.subr.mxu0 0.0
    %1715 = vmatpush1.msra.mxu0 0.0
    %1716 = vmatprep.subr.mxu0 0.0
    %1717 = vmatpush1.msra.mxu0 0.0
    %1718 = vmatprep.subr.mxu0 0.0
    %1719 = vmatpush1.msra.mxu0 0.0
    %1720 = vmatprep.subr.mxu0 0.0
    %1721 = vmatpush1.msra.mxu0 0.0
    %1722 = vmatprep.subr.mxu0 0.0
    %1723 = vmatpush1.msra.mxu0 0.0
    %1724 = vmatprep.subr.mxu0 0.0
    %1725 = vmatpush1.msra.mxu0 0.0
    %1726 = vmatprep.subr.mxu0 0.0
    %1727 = vmatpush1.msra.mxu0 0.0
    %1728 = vmatprep.subr.mxu0 0.0
    %1729 = vmatpush1.msra.mxu0 0.0
    %1730 = vmatprep.subr.mxu0 0.0
    %1731 = vmatpush1.msra.mxu0 0.0
    %1732 = vmatprep.subr.mxu0 0.0
    %1733 = vmatpush1.msra.mxu0 0.0
    %1734 = vmatprep.mubr.f32.mxu0 0.0
    %1735 = vmatmul.mubr.f32.gmra.mrb[0].mxu0 %v1590
    %v1736 = vpop.f32.mrb[0].mxu0
    %v1737 = vadd.f32 %v406, %v1736
    %v1738 = vpop.f32.mrb[0].mxu0
    %1739 = vdwg.mxu0
    %v1740 = vadd.f32 %v1596, %v1666
    %v1741 = vxor.u32 %v1740, 2147483648
    %v1742 = vmul.f32 %v1741, 1.442695
    %v1743 = vpow.pop %v1742
    %v1744 = vadd.f32 %v1743, 1.0
    %v1745 = vrcp.pop %v1744
    %v1746 = vmul.f32 1.0, %v1745
    %v1747 = vadd.f32 %v1597, %v1668
    %v1748 = vxor.u32 %v1747, 2147483648
    %v1749 = vmul.f32 %v1748, 1.442695
    %v1750 = vpow.pop %v1749
    %v1751 = vadd.f32 %v1750, 1.0
    %v1752 = vrcp.pop %v1751
    %v1753 = vmul.f32 1.0, %v1752
    %v1754 = vmul.f32 %v1746, %v1737
    %v1755 = vadd.f32 %v1598, %v1754
    %v1756 = vtanh.pop %v1755
    %v1757 = vsub.f32 1.0, %v1753
    %v1758 = vmul.f32 %v1757, %v1756
    %v1759 = vmul.f32 %v1753, %v1590
    %v1760 = vadd.f32 %v1758, %v1759
    %s1761 = scalar_lea.vmem [#allocation7], 56
    %1762 = vst [vmem:[%s1761] sm:$0xff] %v1760
    %1763 = vst [vmem:[#allocation2] sm:$0xff] %v1760
    // Predicated region
    $region30: #{tpu_custom_call.1} parent=1 // pred_check
      _
    $region31: #{tpu_custom_call.1} parent=1 // pred_check_branch
      %1765 = sbr.rel (0) target = $region33
    $region32: #{tpu_custom_call.1} parent=1 // pred_region
      %s1767 = ssub.s32 1024, 1024
      %1768 = vsyncadd [#allocation6], %s1767
      %s1769 = sshll.u32 [#allocation7], 4
      %s1770 = int_to_ptr.vmem [resolvable:$true] %s1769
      %1775 = dma.vmem_to_hbm [thread:$0]  %s1770, 1024, %s5, [#allocation6], 128, 128, 8
    $region33: #{tpu_custom_call.1} parent=1 // pred_fallthru
      _
    // Predicated region
    $region34: #{tpu_custom_call.1} parent=1 // pred_check
      _
    $region35: #{tpu_custom_call.1} parent=1 // pred_check_branch
      %1777 = sbr.rel (0) target = $region37
    $region36: #{tpu_custom_call.1} parent=1 // pred_region
      %1778 = dma.done [#allocation6], 1024
    $region37: #{tpu_custom_call.1} parent=1 // pred_fallthru
      _
    %1779 = vsyncpa [#allocation5], 1
    %1780 = vsyncpa [#allocation6], 1

</llo_original>
